<compile_context>
chip_gen: v7x
topology: tpu7x:2x2x1
jax: 0.10.0
libtpu: 0.0.40
codegen_flags: <defaults>
</compile_context>

<pallas_src>
import jax
import jax.numpy as jnp
from jax.experimental import pallas as pl
from jax.experimental.pallas import tpu as pltpu


def lstm_pendulum_kernel(x_ref, wpack_ref, fcpack_ref, out_ref):
    """x_ref: (T, B, D) time-major. wpack_ref: packed LSTM weights (D+3H+2, 4H).
    fcpack_ref: packed fc weight+bias (H+1, O). out_ref: (B, O)."""
    T, B, D = x_ref.shape
    H = wpack_ref.shape[1] // 4

    # Static row offsets into the packed weight slab (loaded once).
    wih0 = wpack_ref[0:D, :]                          # (D, 4H)
    whh0 = wpack_ref[D:D + H, :]                      # (H, 4H)
    wih1 = wpack_ref[D + H:D + 2 * H, :]              # (H, 4H)
    whh1 = wpack_ref[D + 2 * H:D + 3 * H, :]          # (H, 4H)
    b0 = wpack_ref[D + 3 * H:D + 3 * H + 1, :]        # (1, 4H)
    b1 = wpack_ref[D + 3 * H + 1:D + 3 * H + 2, :]    # (1, 4H)

    def gate_update(gates, c):
        # Gate column order is i | f | o | g (reordered in the wrapper), so the
        # three sigmoid gates are one contiguous 3H slab and g is one tanh slab.
        sig = jax.nn.sigmoid(gates[:, :3 * H])
        g = jnp.tanh(gates[:, 3 * H:])
        i = sig[:, 0:H]
        f = sig[:, H:2 * H]
        o = sig[:, 2 * H:3 * H]
        c_new = f * c + i * g
        h_new = o * jnp.tanh(c_new)
        return h_new, c_new

    # ---- layer 0: batched input projection hoisted out of the recurrence ----
    x2d = x_ref[...].reshape(T * B, D)                # time-major rows
    xp0 = jnp.dot(x2d, wih0, preferred_element_type=jnp.float32) + b0  # (T*B, 4H)

    h = jnp.zeros((B, H), jnp.float32)
    c = jnp.zeros((B, H), jnp.float32)
    h0_steps = []
    for t in range(T):  # small static trip count -> unrolled (LLO visibility)
        gates = xp0[t * B:(t + 1) * B, :] + jnp.dot(
            h, whh0, preferred_element_type=jnp.float32)
        h, c = gate_update(gates, c)
        h0_steps.append(h)
    h0_all = jnp.concatenate(h0_steps, axis=0)        # (T*B, H), time-major

    # ---- layer 1: batched input projection, then its recurrence -------------
    xp1 = jnp.dot(h0_all, wih1, preferred_element_type=jnp.float32) + b1

    h = jnp.zeros((B, H), jnp.float32)
    c = jnp.zeros((B, H), jnp.float32)
    for t in range(T):
        gates = xp1[t * B:(t + 1) * B, :] + jnp.dot(
            h, whh1, preferred_element_type=jnp.float32)
        h, c = gate_update(gates, c)

    # ---- fc on lstm_out[:, -1, :] == top-layer hidden after last step -------
    wfc = fcpack_ref[0:H, :]                          # (H, O)
    bfc = fcpack_ref[H:H + 1, :]                      # (1, O)
    out_ref[...] = jnp.dot(h, wfc, preferred_element_type=jnp.float32) + bfc


def lstm_pendulum_forward(x, params):
    """x: (batch, seq, input) exactly like the PyTorch batch_first module."""
    B = x.shape[0]
    O = params["fcpack"].shape[1]
    # Layout plumbing in the wrapper: time-major so per-step rows are contiguous.
    x_tbd = jnp.transpose(x, (1, 0, 2))               # (T, B, D)
    vmem = pl.BlockSpec(memory_space=pltpu.MemorySpace.VMEM)
    return pl.pallas_call(
        lstm_pendulum_kernel,
        out_shape=jax.ShapeDtypeStruct((B, O), jnp.float32),
        in_specs=[vmem, vmem, vmem],
        out_specs=vmem,
    )(x_tbd, params["wpack"], params["fcpack"])


def init_params(key, input_size, hidden_size, output_size):
    """PyTorch-style uniform(-1/sqrt(H), 1/sqrt(H)) init, then pre-transposed,
    gate-reordered (i,f,g,o -> i,f,o,g), bias-combined and packed into 2 arrays."""
    H, D, O = hidden_size, input_size, output_size
    bound = 1.0 / float(H) ** 0.5
    ks = jax.random.split(key, 10)

    def u(k_, shape):
        return jax.random.uniform(k_, shape, jnp.float32, -bound, bound)

    # PyTorch-layout parameters.
    w_ih0 = u(ks[0], (4 * H, D))
    w_hh0 = u(ks[1], (4 * H, H))
    b_ih0 = u(ks[2], (4 * H,))
    b_hh0 = u(ks[3], (4 * H,))
    w_ih1 = u(ks[4], (4 * H, H))
    w_hh1 = u(ks[5], (4 * H, H))
    b_ih1 = u(ks[6], (4 * H,))
    b_hh1 = u(ks[7], (4 * H,))
    w_fc = u(ks[8], (O, H))
    b_fc = u(ks[9], (O,))

    def reorder(w):  # gate blocks i,f,g,o (PyTorch) -> i,f,o,g along axis 0
        i, f, g, o = jnp.split(w, 4, axis=0)
        return jnp.concatenate([i, f, o, g], axis=0)

    wih0_t = jnp.transpose(reorder(w_ih0))                   # (D, 4H)
    whh0_t = jnp.transpose(reorder(w_hh0))                   # (H, 4H)
    b0 = reorder(b_ih0 + b_hh0).reshape(1, 4 * H)            # (1, 4H)
    wih1_t = jnp.transpose(reorder(w_ih1))                   # (H, 4H)
    whh1_t = jnp.transpose(reorder(w_hh1))                   # (H, 4H)
    b1 = reorder(b_ih1 + b_hh1).reshape(1, 4 * H)            # (1, 4H)

    wpack = jnp.concatenate([wih0_t, whh0_t, wih1_t, whh1_t, b0, b1],
                            axis=0)                          # (D+3H+2, 4H)
    fcpack = jnp.concatenate([jnp.transpose(w_fc),
                              b_fc.reshape(1, O)], axis=0)   # (H+1, O)
    return {"wpack": wpack, "fcpack": fcpack}


if __name__ == "__main__":
    batch, seq, input_size = 2, 8, 4
    hidden_size, output_size = 32, 3     # 4H = 128 -> exactly one vreg lane-width

    key = jax.random.PRNGKey(0)
    kx, kp = jax.random.split(key)
    x = jax.random.normal(kx, (batch, seq, input_size), jnp.float32)
    params = init_params(kp, input_size, hidden_size, output_size)

    out = lstm_pendulum_forward(x, params)
    out = jax.block_until_ready(out)
    assert out.shape == (batch, output_size)
    print("KERNEL_OK")
</pallas_src>

<mosaic_0001>
module attributes {stable_mosaic.version = 11 : i64} {
  func.func @lstm_pendulum_kernel(%arg0: memref<8x2x4xf32, #tpu.memory_space<vmem>>, %arg1: memref<102x128xf32, #tpu.memory_space<vmem>>, %arg2: memref<33x3xf32, #tpu.memory_space<vmem>>, %arg3: memref<2x3xf32, #tpu.memory_space<vmem>>) attributes {dimension_semantics = [], scalar_prefetch = 0 : i64, scratch_operands = 0 : i64, tpu.core_type = #tpu.core_type<tc>} {
    %c0 = arith.constant 0 : index
    %c0_0 = arith.constant 0 : index
    %0 = vector.load %arg1[%c0, %c0_0] : memref<102x128xf32, #tpu.memory_space<vmem>>, vector<4x128xf32>
    %c4 = arith.constant 4 : index
    %c0_1 = arith.constant 0 : index
    %1 = vector.load %arg1[%c4, %c0_1] : memref<102x128xf32, #tpu.memory_space<vmem>>, vector<32x128xf32>
    %c36 = arith.constant 36 : index
    %c0_2 = arith.constant 0 : index
    %2 = vector.load %arg1[%c36, %c0_2] : memref<102x128xf32, #tpu.memory_space<vmem>>, vector<32x128xf32>
    %c68 = arith.constant 68 : index
    %c0_3 = arith.constant 0 : index
    %3 = vector.load %arg1[%c68, %c0_3] : memref<102x128xf32, #tpu.memory_space<vmem>>, vector<32x128xf32>
    %c100 = arith.constant 100 : index
    %c0_4 = arith.constant 0 : index
    %4 = vector.load %arg1[%c100, %c0_4] : memref<102x128xf32, #tpu.memory_space<vmem>>, vector<1x128xf32>
    %c101 = arith.constant 101 : index
    %c0_5 = arith.constant 0 : index
    %5 = vector.load %arg1[%c101, %c0_5] : memref<102x128xf32, #tpu.memory_space<vmem>>, vector<1x128xf32>
    %c0_6 = arith.constant 0 : index
    %c0_7 = arith.constant 0 : index
    %c0_8 = arith.constant 0 : index
    %6 = vector.load %arg0[%c0_6, %c0_7, %c0_8] : memref<8x2x4xf32, #tpu.memory_space<vmem>>, vector<8x2x4xf32>
    %7 = vector.shape_cast %6 : vector<8x2x4xf32> to vector<16x4xf32>
    %cst = arith.constant dense<0.000000e+00> : vector<16x128xf32>
    %8 = tpu.matmul %7, %0, %cst {dimension_numbers = #tpu.dot_dimension_numbers<[1], [0], [0], [1], [0, 0, 1, 1], [], []>} : vector<16x4xf32>, vector<4x128xf32>, vector<16x128xf32> -> vector<16x128xf32>
    %9 = vector.broadcast %4 : vector<1x128xf32> to vector<16x128xf32>
    %10 = arith.addf %8, %9 : vector<16x128xf32>
    %cst_9 = arith.constant 0.000000e+00 : f32
    %11 = vector.broadcast %cst_9 : f32 to vector<2x32xf32>
    %cst_10 = arith.constant 0.000000e+00 : f32
    %12 = vector.broadcast %cst_10 : f32 to vector<2x32xf32>
    %13 = vector.extract_strided_slice %10 {offsets = [0, 0], sizes = [2, 128], strides = [1, 1]} : vector<16x128xf32> to vector<2x128xf32>
    %cst_11 = arith.constant dense<0.000000e+00> : vector<2x128xf32>
    %14 = tpu.matmul %11, %1, %cst_11 {dimension_numbers = #tpu.dot_dimension_numbers<[1], [0], [0], [1], [0, 0, 1, 1], [], []>} : vector<2x32xf32>, vector<32x128xf32>, vector<2x128xf32> -> vector<2x128xf32>
    %15 = arith.addf %13, %14 : vector<2x128xf32>
    %16 = vector.extract_strided_slice %15 {offsets = [0, 0], sizes = [2, 96], strides = [1, 1]} : vector<2x128xf32> to vector<2x96xf32>
    %17 = arith.negf %16 : vector<2x96xf32>
    %18 = math.exp %17 : vector<2x96xf32>
    %cst_12 = arith.constant 1.000000e+00 : f32
    %19 = vector.broadcast %cst_12 : f32 to vector<2x96xf32>
    %20 = arith.addf %19, %18 : vector<2x96xf32>
    %21 = arith.divf %19, %20 : vector<2x96xf32>
    %22 = vector.extract_strided_slice %15 {offsets = [0, 96], sizes = [2, 32], strides = [1, 1]} : vector<2x128xf32> to vector<2x32xf32>
    %23 = math.tanh %22 : vector<2x32xf32>
    %24 = vector.extract_strided_slice %21 {offsets = [0, 0], sizes = [2, 32], strides = [1, 1]} : vector<2x96xf32> to vector<2x32xf32>
    %25 = vector.extract_strided_slice %21 {offsets = [0, 32], sizes = [2, 32], strides = [1, 1]} : vector<2x96xf32> to vector<2x32xf32>
    %26 = vector.extract_strided_slice %21 {offsets = [0, 64], sizes = [2, 32], strides = [1, 1]} : vector<2x96xf32> to vector<2x32xf32>
    %27 = arith.mulf %25, %12 : vector<2x32xf32>
    %28 = arith.mulf %24, %23 : vector<2x32xf32>
    %29 = arith.addf %27, %28 : vector<2x32xf32>
    %30 = math.tanh %29 : vector<2x32xf32>
    %31 = arith.mulf %26, %30 : vector<2x32xf32>
    %32 = vector.extract_strided_slice %10 {offsets = [2, 0], sizes = [2, 128], strides = [1, 1]} : vector<16x128xf32> to vector<2x128xf32>
    %cst_13 = arith.constant dense<0.000000e+00> : vector<2x128xf32>
    %33 = tpu.matmul %31, %1, %cst_13 {dimension_numbers = #tpu.dot_dimension_numbers<[1], [0], [0], [1], [0, 0, 1, 1], [], []>} : vector<2x32xf32>, vector<32x128xf32>, vector<2x128xf32> -> vector<2x128xf32>
    %34 = arith.addf %32, %33 : vector<2x128xf32>
    %35 = vector.extract_strided_slice %34 {offsets = [0, 0], sizes = [2, 96], strides = [1, 1]} : vector<2x128xf32> to vector<2x96xf32>
    %36 = arith.negf %35 : vector<2x96xf32>
    %37 = math.exp %36 : vector<2x96xf32>
    %cst_14 = arith.constant 1.000000e+00 : f32
    %38 = vector.broadcast %cst_14 : f32 to vector<2x96xf32>
    %39 = arith.addf %38, %37 : vector<2x96xf32>
    %40 = arith.divf %38, %39 : vector<2x96xf32>
    %41 = vector.extract_strided_slice %34 {offsets = [0, 96], sizes = [2, 32], strides = [1, 1]} : vector<2x128xf32> to vector<2x32xf32>
    %42 = math.tanh %41 : vector<2x32xf32>
    %43 = vector.extract_strided_slice %40 {offsets = [0, 0], sizes = [2, 32], strides = [1, 1]} : vector<2x96xf32> to vector<2x32xf32>
    %44 = vector.extract_strided_slice %40 {offsets = [0, 32], sizes = [2, 32], strides = [1, 1]} : vector<2x96xf32> to vector<2x32xf32>
    %45 = vector.extract_strided_slice %40 {offsets = [0, 64], sizes = [2, 32], strides = [1, 1]} : vector<2x96xf32> to vector<2x32xf32>
    %46 = arith.mulf %44, %29 : vector<2x32xf32>
    %47 = arith.mulf %43, %42 : vector<2x32xf32>
    %48 = arith.addf %46, %47 : vector<2x32xf32>
    %49 = math.tanh %48 : vector<2x32xf32>
    %50 = arith.mulf %45, %49 : vector<2x32xf32>
    %51 = vector.extract_strided_slice %10 {offsets = [4, 0], sizes = [2, 128], strides = [1, 1]} : vector<16x128xf32> to vector<2x128xf32>
    %cst_15 = arith.constant dense<0.000000e+00> : vector<2x128xf32>
    %52 = tpu.matmul %50, %1, %cst_15 {dimension_numbers = #tpu.dot_dimension_numbers<[1], [0], [0], [1], [0, 0, 1, 1], [], []>} : vector<2x32xf32>, vector<32x128xf32>, vector<2x128xf32> -> vector<2x128xf32>
    %53 = arith.addf %51, %52 : vector<2x128xf32>
    %54 = vector.extract_strided_slice %53 {offsets = [0, 0], sizes = [2, 96], strides = [1, 1]} : vector<2x128xf32> to vector<2x96xf32>
    %55 = arith.negf %54 : vector<2x96xf32>
    %56 = math.exp %55 : vector<2x96xf32>
    %cst_16 = arith.constant 1.000000e+00 : f32
    %57 = vector.broadcast %cst_16 : f32 to vector<2x96xf32>
    %58 = arith.addf %57, %56 : vector<2x96xf32>
    %59 = arith.divf %57, %58 : vector<2x96xf32>
    %60 = vector.extract_strided_slice %53 {offsets = [0, 96], sizes = [2, 32], strides = [1, 1]} : vector<2x128xf32> to vector<2x32xf32>
    %61 = math.tanh %60 : vector<2x32xf32>
    %62 = vector.extract_strided_slice %59 {offsets = [0, 0], sizes = [2, 32], strides = [1, 1]} : vector<2x96xf32> to vector<2x32xf32>
    %63 = vector.extract_strided_slice %59 {offsets = [0, 32], sizes = [2, 32], strides = [1, 1]} : vector<2x96xf32> to vector<2x32xf32>
    %64 = vector.extract_strided_slice %59 {offsets = [0, 64], sizes = [2, 32], strides = [1, 1]} : vector<2x96xf32> to vector<2x32xf32>
    %65 = arith.mulf %63, %48 : vector<2x32xf32>
    %66 = arith.mulf %62, %61 : vector<2x32xf32>
    %67 = arith.addf %65, %66 : vector<2x32xf32>
    %68 = math.tanh %67 : vector<2x32xf32>
    %69 = arith.mulf %64, %68 : vector<2x32xf32>
    %70 = vector.extract_strided_slice %10 {offsets = [6, 0], sizes = [2, 128], strides = [1, 1]} : vector<16x128xf32> to vector<2x128xf32>
    %cst_17 = arith.constant dense<0.000000e+00> : vector<2x128xf32>
    %71 = tpu.matmul %69, %1, %cst_17 {dimension_numbers = #tpu.dot_dimension_numbers<[1], [0], [0], [1], [0, 0, 1, 1], [], []>} : vector<2x32xf32>, vector<32x128xf32>, vector<2x128xf32> -> vector<2x128xf32>
    %72 = arith.addf %70, %71 : vector<2x128xf32>
    %73 = vector.extract_strided_slice %72 {offsets = [0, 0], sizes = [2, 96], strides = [1, 1]} : vector<2x128xf32> to vector<2x96xf32>
    %74 = arith.negf %73 : vector<2x96xf32>
    %75 = math.exp %74 : vector<2x96xf32>
    %cst_18 = arith.constant 1.000000e+00 : f32
    %76 = vector.broadcast %cst_18 : f32 to vector<2x96xf32>
    %77 = arith.addf %76, %75 : vector<2x96xf32>
    %78 = arith.divf %76, %77 : vector<2x96xf32>
    %79 = vector.extract_strided_slice %72 {offsets = [0, 96], sizes = [2, 32], strides = [1, 1]} : vector<2x128xf32> to vector<2x32xf32>
    %80 = math.tanh %79 : vector<2x32xf32>
    %81 = vector.extract_strided_slice %78 {offsets = [0, 0], sizes = [2, 32], strides = [1, 1]} : vector<2x96xf32> to vector<2x32xf32>
    %82 = vector.extract_strided_slice %78 {offsets = [0, 32], sizes = [2, 32], strides = [1, 1]} : vector<2x96xf32> to vector<2x32xf32>
    %83 = vector.extract_strided_slice %78 {offsets = [0, 64], sizes = [2, 32], strides = [1, 1]} : vector<2x96xf32> to vector<2x32xf32>
    %84 = arith.mulf %82, %67 : vector<2x32xf32>
    %85 = arith.mulf %81, %80 : vector<2x32xf32>
    %86 = arith.addf %84, %85 : vector<2x32xf32>
    %87 = math.tanh %86 : vector<2x32xf32>
    %88 = arith.mulf %83, %87 : vector<2x32xf32>
    %89 = vector.extract_strided_slice %10 {offsets = [8, 0], sizes = [2, 128], strides = [1, 1]} : vector<16x128xf32> to vector<2x128xf32>
    %cst_19 = arith.constant dense<0.000000e+00> : vector<2x128xf32>
    %90 = tpu.matmul %88, %1, %cst_19 {dimension_numbers = #tpu.dot_dimension_numbers<[1], [0], [0], [1], [0, 0, 1, 1], [], []>} : vector<2x32xf32>, vector<32x128xf32>, vector<2x128xf32> -> vector<2x128xf32>
    %91 = arith.addf %89, %90 : vector<2x128xf32>
    %92 = vector.extract_strided_slice %91 {offsets = [0, 0], sizes = [2, 96], strides = [1, 1]} : vector<2x128xf32> to vector<2x96xf32>
    %93 = arith.negf %92 : vector<2x96xf32>
    %94 = math.exp %93 : vector<2x96xf32>
    %cst_20 = arith.constant 1.000000e+00 : f32
    %95 = vector.broadcast %cst_20 : f32 to vector<2x96xf32>
    %96 = arith.addf %95, %94 : vector<2x96xf32>
    %97 = arith.divf %95, %96 : vector<2x96xf32>
    %98 = vector.extract_strided_slice %91 {offsets = [0, 96], sizes = [2, 32], strides = [1, 1]} : vector<2x128xf32> to vector<2x32xf32>
    %99 = math.tanh %98 : vector<2x32xf32>
    %100 = vector.extract_strided_slice %97 {offsets = [0, 0], sizes = [2, 32], strides = [1, 1]} : vector<2x96xf32> to vector<2x32xf32>
    %101 = vector.extract_strided_slice %97 {offsets = [0, 32], sizes = [2, 32], strides = [1, 1]} : vector<2x96xf32> to vector<2x32xf32>
    %102 = vector.extract_strided_slice %97 {offsets = [0, 64], sizes = [2, 32], strides = [1, 1]} : vector<2x96xf32> to vector<2x32xf32>
    %103 = arith.mulf %101, %86 : vector<2x32xf32>
    %104 = arith.mulf %100, %99 : vector<2x32xf32>
    %105 = arith.addf %103, %104 : vector<2x32xf32>
    %106 = math.tanh %105 : vector<2x32xf32>
    %107 = arith.mulf %102, %106 : vector<2x32xf32>
    %108 = vector.extract_strided_slice %10 {offsets = [10, 0], sizes = [2, 128], strides = [1, 1]} : vector<16x128xf32> to vector<2x128xf32>
    %cst_21 = arith.constant dense<0.000000e+00> : vector<2x128xf32>
    %109 = tpu.matmul %107, %1, %cst_21 {dimension_numbers = #tpu.dot_dimension_numbers<[1], [0], [0], [1], [0, 0, 1, 1], [], []>} : vector<2x32xf32>, vector<32x128xf32>, vector<2x128xf32> -> vector<2x128xf32>
    %110 = arith.addf %108, %109 : vector<2x128xf32>
    %111 = vector.extract_strided_slice %110 {offsets = [0, 0], sizes = [2, 96], strides = [1, 1]} : vector<2x128xf32> to vector<2x96xf32>
    %112 = arith.negf %111 : vector<2x96xf32>
    %113 = math.exp %112 : vector<2x96xf32>
    %cst_22 = arith.constant 1.000000e+00 : f32
    %114 = vector.broadcast %cst_22 : f32 to vector<2x96xf32>
    %115 = arith.addf %114, %113 : vector<2x96xf32>
    %116 = arith.divf %114, %115 : vector<2x96xf32>
    %117 = vector.extract_strided_slice %110 {offsets = [0, 96], sizes = [2, 32], strides = [1, 1]} : vector<2x128xf32> to vector<2x32xf32>
    %118 = math.tanh %117 : vector<2x32xf32>
    %119 = vector.extract_strided_slice %116 {offsets = [0, 0], sizes = [2, 32], strides = [1, 1]} : vector<2x96xf32> to vector<2x32xf32>
    %120 = vector.extract_strided_slice %116 {offsets = [0, 32], sizes = [2, 32], strides = [1, 1]} : vector<2x96xf32> to vector<2x32xf32>
    %121 = vector.extract_strided_slice %116 {offsets = [0, 64], sizes = [2, 32], strides = [1, 1]} : vector<2x96xf32> to vector<2x32xf32>
    %122 = arith.mulf %120, %105 : vector<2x32xf32>
    %123 = arith.mulf %119, %118 : vector<2x32xf32>
    %124 = arith.addf %122, %123 : vector<2x32xf32>
    %125 = math.tanh %124 : vector<2x32xf32>
    %126 = arith.mulf %121, %125 : vector<2x32xf32>
    %127 = vector.extract_strided_slice %10 {offsets = [12, 0], sizes = [2, 128], strides = [1, 1]} : vector<16x128xf32> to vector<2x128xf32>
    %cst_23 = arith.constant dense<0.000000e+00> : vector<2x128xf32>
    %128 = tpu.matmul %126, %1, %cst_23 {dimension_numbers = #tpu.dot_dimension_numbers<[1], [0], [0], [1], [0, 0, 1, 1], [], []>} : vector<2x32xf32>, vector<32x128xf32>, vector<2x128xf32> -> vector<2x128xf32>
    %129 = arith.addf %127, %128 : vector<2x128xf32>
    %130 = vector.extract_strided_slice %129 {offsets = [0, 0], sizes = [2, 96], strides = [1, 1]} : vector<2x128xf32> to vector<2x96xf32>
    %131 = arith.negf %130 : vector<2x96xf32>
    %132 = math.exp %131 : vector<2x96xf32>
    %cst_24 = arith.constant 1.000000e+00 : f32
    %133 = vector.broadcast %cst_24 : f32 to vector<2x96xf32>
    %134 = arith.addf %133, %132 : vector<2x96xf32>
    %135 = arith.divf %133, %134 : vector<2x96xf32>
    %136 = vector.extract_strided_slice %129 {offsets = [0, 96], sizes = [2, 32], strides = [1, 1]} : vector<2x128xf32> to vector<2x32xf32>
    %137 = math.tanh %136 : vector<2x32xf32>
    %138 = vector.extract_strided_slice %135 {offsets = [0, 0], sizes = [2, 32], strides = [1, 1]} : vector<2x96xf32> to vector<2x32xf32>
    %139 = vector.extract_strided_slice %135 {offsets = [0, 32], sizes = [2, 32], strides = [1, 1]} : vector<2x96xf32> to vector<2x32xf32>
    %140 = vector.extract_strided_slice %135 {offsets = [0, 64], sizes = [2, 32], strides = [1, 1]} : vector<2x96xf32> to vector<2x32xf32>
    %141 = arith.mulf %139, %124 : vector<2x32xf32>
    %142 = arith.mulf %138, %137 : vector<2x32xf32>
    %143 = arith.addf %141, %142 : vector<2x32xf32>
    %144 = math.tanh %143 : vector<2x32xf32>
    %145 = arith.mulf %140, %144 : vector<2x32xf32>
    %146 = vector.extract_strided_slice %10 {offsets = [14, 0], sizes = [2, 128], strides = [1, 1]} : vector<16x128xf32> to vector<2x128xf32>
    %cst_25 = arith.constant dense<0.000000e+00> : vector<2x128xf32>
    %147 = tpu.matmul %145, %1, %cst_25 {dimension_numbers = #tpu.dot_dimension_numbers<[1], [0], [0], [1], [0, 0, 1, 1], [], []>} : vector<2x32xf32>, vector<32x128xf32>, vector<2x128xf32> -> vector<2x128xf32>
    %148 = arith.addf %146, %147 : vector<2x128xf32>
    %149 = vector.extract_strided_slice %148 {offsets = [0, 0], sizes = [2, 96], strides = [1, 1]} : vector<2x128xf32> to vector<2x96xf32>
    %150 = arith.negf %149 : vector<2x96xf32>
    %151 = math.exp %150 : vector<2x96xf32>
    %cst_26 = arith.constant 1.000000e+00 : f32
    %152 = vector.broadcast %cst_26 : f32 to vector<2x96xf32>
    %153 = arith.addf %152, %151 : vector<2x96xf32>
    %154 = arith.divf %152, %153 : vector<2x96xf32>
    %155 = vector.extract_strided_slice %148 {offsets = [0, 96], sizes = [2, 32], strides = [1, 1]} : vector<2x128xf32> to vector<2x32xf32>
    %156 = math.tanh %155 : vector<2x32xf32>
    %157 = vector.extract_strided_slice %154 {offsets = [0, 0], sizes = [2, 32], strides = [1, 1]} : vector<2x96xf32> to vector<2x32xf32>
    %158 = vector.extract_strided_slice %154 {offsets = [0, 32], sizes = [2, 32], strides = [1, 1]} : vector<2x96xf32> to vector<2x32xf32>
    %159 = vector.extract_strided_slice %154 {offsets = [0, 64], sizes = [2, 32], strides = [1, 1]} : vector<2x96xf32> to vector<2x32xf32>
    %160 = arith.mulf %158, %143 : vector<2x32xf32>
    %161 = arith.mulf %157, %156 : vector<2x32xf32>
    %162 = arith.addf %160, %161 : vector<2x32xf32>
    %163 = math.tanh %162 : vector<2x32xf32>
    %164 = arith.mulf %159, %163 : vector<2x32xf32>
    %165 = tpu.concatenate %31, %50, %69, %88, %107, %126, %145, %164 in 0 : vector<2x32xf32>, vector<2x32xf32>, vector<2x32xf32>, vector<2x32xf32>, vector<2x32xf32>, vector<2x32xf32>, vector<2x32xf32>, vector<2x32xf32> -> vector<16x32xf32>
    %cst_27 = arith.constant dense<0.000000e+00> : vector<16x128xf32>
    %166 = tpu.matmul %165, %2, %cst_27 {dimension_numbers = #tpu.dot_dimension_numbers<[1], [0], [0], [1], [0, 0, 1, 1], [], []>} : vector<16x32xf32>, vector<32x128xf32>, vector<16x128xf32> -> vector<16x128xf32>
    %167 = vector.broadcast %5 : vector<1x128xf32> to vector<16x128xf32>
    %168 = arith.addf %166, %167 : vector<16x128xf32>
    %cst_28 = arith.constant 0.000000e+00 : f32
    %169 = vector.broadcast %cst_28 : f32 to vector<2x32xf32>
    %cst_29 = arith.constant 0.000000e+00 : f32
    %170 = vector.broadcast %cst_29 : f32 to vector<2x32xf32>
    %171 = vector.extract_strided_slice %168 {offsets = [0, 0], sizes = [2, 128], strides = [1, 1]} : vector<16x128xf32> to vector<2x128xf32>
    %cst_30 = arith.constant dense<0.000000e+00> : vector<2x128xf32>
    %172 = tpu.matmul %169, %3, %cst_30 {dimension_numbers = #tpu.dot_dimension_numbers<[1], [0], [0], [1], [0, 0, 1, 1], [], []>} : vector<2x32xf32>, vector<32x128xf32>, vector<2x128xf32> -> vector<2x128xf32>
    %173 = arith.addf %171, %172 : vector<2x128xf32>
    %174 = vector.extract_strided_slice %173 {offsets = [0, 0], sizes = [2, 96], strides = [1, 1]} : vector<2x128xf32> to vector<2x96xf32>
    %175 = arith.negf %174 : vector<2x96xf32>
    %176 = math.exp %175 : vector<2x96xf32>
    %cst_31 = arith.constant 1.000000e+00 : f32
    %177 = vector.broadcast %cst_31 : f32 to vector<2x96xf32>
    %178 = arith.addf %177, %176 : vector<2x96xf32>
    %179 = arith.divf %177, %178 : vector<2x96xf32>
    %180 = vector.extract_strided_slice %173 {offsets = [0, 96], sizes = [2, 32], strides = [1, 1]} : vector<2x128xf32> to vector<2x32xf32>
    %181 = math.tanh %180 : vector<2x32xf32>
    %182 = vector.extract_strided_slice %179 {offsets = [0, 0], sizes = [2, 32], strides = [1, 1]} : vector<2x96xf32> to vector<2x32xf32>
    %183 = vector.extract_strided_slice %179 {offsets = [0, 32], sizes = [2, 32], strides = [1, 1]} : vector<2x96xf32> to vector<2x32xf32>
    %184 = vector.extract_strided_slice %179 {offsets = [0, 64], sizes = [2, 32], strides = [1, 1]} : vector<2x96xf32> to vector<2x32xf32>
    %185 = arith.mulf %183, %170 : vector<2x32xf32>
    %186 = arith.mulf %182, %181 : vector<2x32xf32>
    %187 = arith.addf %185, %186 : vector<2x32xf32>
    %188 = math.tanh %187 : vector<2x32xf32>
    %189 = arith.mulf %184, %188 : vector<2x32xf32>
    %190 = vector.extract_strided_slice %168 {offsets = [2, 0], sizes = [2, 128], strides = [1, 1]} : vector<16x128xf32> to vector<2x128xf32>
    %cst_32 = arith.constant dense<0.000000e+00> : vector<2x128xf32>
    %191 = tpu.matmul %189, %3, %cst_32 {dimension_numbers = #tpu.dot_dimension_numbers<[1], [0], [0], [1], [0, 0, 1, 1], [], []>} : vector<2x32xf32>, vector<32x128xf32>, vector<2x128xf32> -> vector<2x128xf32>
    %192 = arith.addf %190, %191 : vector<2x128xf32>
    %193 = vector.extract_strided_slice %192 {offsets = [0, 0], sizes = [2, 96], strides = [1, 1]} : vector<2x128xf32> to vector<2x96xf32>
    %194 = arith.negf %193 : vector<2x96xf32>
    %195 = math.exp %194 : vector<2x96xf32>
    %cst_33 = arith.constant 1.000000e+00 : f32
    %196 = vector.broadcast %cst_33 : f32 to vector<2x96xf32>
    %197 = arith.addf %196, %195 : vector<2x96xf32>
    %198 = arith.divf %196, %197 : vector<2x96xf32>
    %199 = vector.extract_strided_slice %192 {offsets = [0, 96], sizes = [2, 32], strides = [1, 1]} : vector<2x128xf32> to vector<2x32xf32>
    %200 = math.tanh %199 : vector<2x32xf32>
    %201 = vector.extract_strided_slice %198 {offsets = [0, 0], sizes = [2, 32], strides = [1, 1]} : vector<2x96xf32> to vector<2x32xf32>
    %202 = vector.extract_strided_slice %198 {offsets = [0, 32], sizes = [2, 32], strides = [1, 1]} : vector<2x96xf32> to vector<2x32xf32>
    %203 = vector.extract_strided_slice %198 {offsets = [0, 64], sizes = [2, 32], strides = [1, 1]} : vector<2x96xf32> to vector<2x32xf32>
    %204 = arith.mulf %202, %187 : vector<2x32xf32>
    %205 = arith.mulf %201, %200 : vector<2x32xf32>
    %206 = arith.addf %204, %205 : vector<2x32xf32>
    %207 = math.tanh %206 : vector<2x32xf32>
    %208 = arith.mulf %203, %207 : vector<2x32xf32>
    %209 = vector.extract_strided_slice %168 {offsets = [4, 0], sizes = [2, 128], strides = [1, 1]} : vector<16x128xf32> to vector<2x128xf32>
    %cst_34 = arith.constant dense<0.000000e+00> : vector<2x128xf32>
    %210 = tpu.matmul %208, %3, %cst_34 {dimension_numbers = #tpu.dot_dimension_numbers<[1], [0], [0], [1], [0, 0, 1, 1], [], []>} : vector<2x32xf32>, vector<32x128xf32>, vector<2x128xf32> -> vector<2x128xf32>
    %211 = arith.addf %209, %210 : vector<2x128xf32>
    %212 = vector.extract_strided_slice %211 {offsets = [0, 0], sizes = [2, 96], strides = [1, 1]} : vector<2x128xf32> to vector<2x96xf32>
    %213 = arith.negf %212 : vector<2x96xf32>
    %214 = math.exp %213 : vector<2x96xf32>
    %cst_35 = arith.constant 1.000000e+00 : f32
    %215 = vector.broadcast %cst_35 : f32 to vector<2x96xf32>
    %216 = arith.addf %215, %214 : vector<2x96xf32>
    %217 = arith.divf %215, %216 : vector<2x96xf32>
    %218 = vector.extract_strided_slice %211 {offsets = [0, 96], sizes = [2, 32], strides = [1, 1]} : vector<2x128xf32> to vector<2x32xf32>
    %219 = math.tanh %218 : vector<2x32xf32>
    %220 = vector.extract_strided_slice %217 {offsets = [0, 0], sizes = [2, 32], strides = [1, 1]} : vector<2x96xf32> to vector<2x32xf32>
    %221 = vector.extract_strided_slice %217 {offsets = [0, 32], sizes = [2, 32], strides = [1, 1]} : vector<2x96xf32> to vector<2x32xf32>
    %222 = vector.extract_strided_slice %217 {offsets = [0, 64], sizes = [2, 32], strides = [1, 1]} : vector<2x96xf32> to vector<2x32xf32>
    %223 = arith.mulf %221, %206 : vector<2x32xf32>
    %224 = arith.mulf %220, %219 : vector<2x32xf32>
    %225 = arith.addf %223, %224 : vector<2x32xf32>
    %226 = math.tanh %225 : vector<2x32xf32>
    %227 = arith.mulf %222, %226 : vector<2x32xf32>
    %228 = vector.extract_strided_slice %168 {offsets = [6, 0], sizes = [2, 128], strides = [1, 1]} : vector<16x128xf32> to vector<2x128xf32>
    %cst_36 = arith.constant dense<0.000000e+00> : vector<2x128xf32>
    %229 = tpu.matmul %227, %3, %cst_36 {dimension_numbers = #tpu.dot_dimension_numbers<[1], [0], [0], [1], [0, 0, 1, 1], [], []>} : vector<2x32xf32>, vector<32x128xf32>, vector<2x128xf32> -> vector<2x128xf32>
    %230 = arith.addf %228, %229 : vector<2x128xf32>
    %231 = vector.extract_strided_slice %230 {offsets = [0, 0], sizes = [2, 96], strides = [1, 1]} : vector<2x128xf32> to vector<2x96xf32>
    %232 = arith.negf %231 : vector<2x96xf32>
    %233 = math.exp %232 : vector<2x96xf32>
    %cst_37 = arith.constant 1.000000e+00 : f32
    %234 = vector.broadcast %cst_37 : f32 to vector<2x96xf32>
    %235 = arith.addf %234, %233 : vector<2x96xf32>
    %236 = arith.divf %234, %235 : vector<2x96xf32>
    %237 = vector.extract_strided_slice %230 {offsets = [0, 96], sizes = [2, 32], strides = [1, 1]} : vector<2x128xf32> to vector<2x32xf32>
    %238 = math.tanh %237 : vector<2x32xf32>
    %239 = vector.extract_strided_slice %236 {offsets = [0, 0], sizes = [2, 32], strides = [1, 1]} : vector<2x96xf32> to vector<2x32xf32>
    %240 = vector.extract_strided_slice %236 {offsets = [0, 32], sizes = [2, 32], strides = [1, 1]} : vector<2x96xf32> to vector<2x32xf32>
    %241 = vector.extract_strided_slice %236 {offsets = [0, 64], sizes = [2, 32], strides = [1, 1]} : vector<2x96xf32> to vector<2x32xf32>
    %242 = arith.mulf %240, %225 : vector<2x32xf32>
    %243 = arith.mulf %239, %238 : vector<2x32xf32>
    %244 = arith.addf %242, %243 : vector<2x32xf32>
    %245 = math.tanh %244 : vector<2x32xf32>
    %246 = arith.mulf %241, %245 : vector<2x32xf32>
    %247 = vector.extract_strided_slice %168 {offsets = [8, 0], sizes = [2, 128], strides = [1, 1]} : vector<16x128xf32> to vector<2x128xf32>
    %cst_38 = arith.constant dense<0.000000e+00> : vector<2x128xf32>
    %248 = tpu.matmul %246, %3, %cst_38 {dimension_numbers = #tpu.dot_dimension_numbers<[1], [0], [0], [1], [0, 0, 1, 1], [], []>} : vector<2x32xf32>, vector<32x128xf32>, vector<2x128xf32> -> vector<2x128xf32>
    %249 = arith.addf %247, %248 : vector<2x128xf32>
    %250 = vector.extract_strided_slice %249 {offsets = [0, 0], sizes = [2, 96], strides = [1, 1]} : vector<2x128xf32> to vector<2x96xf32>
    %251 = arith.negf %250 : vector<2x96xf32>
    %252 = math.exp %251 : vector<2x96xf32>
    %cst_39 = arith.constant 1.000000e+00 : f32
    %253 = vector.broadcast %cst_39 : f32 to vector<2x96xf32>
    %254 = arith.addf %253, %252 : vector<2x96xf32>
    %255 = arith.divf %253, %254 : vector<2x96xf32>
    %256 = vector.extract_strided_slice %249 {offsets = [0, 96], sizes = [2, 32], strides = [1, 1]} : vector<2x128xf32> to vector<2x32xf32>
    %257 = math.tanh %256 : vector<2x32xf32>
    %258 = vector.extract_strided_slice %255 {offsets = [0, 0], sizes = [2, 32], strides = [1, 1]} : vector<2x96xf32> to vector<2x32xf32>
    %259 = vector.extract_strided_slice %255 {offsets = [0, 32], sizes = [2, 32], strides = [1, 1]} : vector<2x96xf32> to vector<2x32xf32>
    %260 = vector.extract_strided_slice %255 {offsets = [0, 64], sizes = [2, 32], strides = [1, 1]} : vector<2x96xf32> to vector<2x32xf32>
    %261 = arith.mulf %259, %244 : vector<2x32xf32>
    %262 = arith.mulf %258, %257 : vector<2x32xf32>
    %263 = arith.addf %261, %262 : vector<2x32xf32>
    %264 = math.tanh %263 : vector<2x32xf32>
    %265 = arith.mulf %260, %264 : vector<2x32xf32>
    %266 = vector.extract_strided_slice %168 {offsets = [10, 0], sizes = [2, 128], strides = [1, 1]} : vector<16x128xf32> to vector<2x128xf32>
    %cst_40 = arith.constant dense<0.000000e+00> : vector<2x128xf32>
    %267 = tpu.matmul %265, %3, %cst_40 {dimension_numbers = #tpu.dot_dimension_numbers<[1], [0], [0], [1], [0, 0, 1, 1], [], []>} : vector<2x32xf32>, vector<32x128xf32>, vector<2x128xf32> -> vector<2x128xf32>
    %268 = arith.addf %266, %267 : vector<2x128xf32>
    %269 = vector.extract_strided_slice %268 {offsets = [0, 0], sizes = [2, 96], strides = [1, 1]} : vector<2x128xf32> to vector<2x96xf32>
    %270 = arith.negf %269 : vector<2x96xf32>
    %271 = math.exp %270 : vector<2x96xf32>
    %cst_41 = arith.constant 1.000000e+00 : f32
    %272 = vector.broadcast %cst_41 : f32 to vector<2x96xf32>
    %273 = arith.addf %272, %271 : vector<2x96xf32>
    %274 = arith.divf %272, %273 : vector<2x96xf32>
    %275 = vector.extract_strided_slice %268 {offsets = [0, 96], sizes = [2, 32], strides = [1, 1]} : vector<2x128xf32> to vector<2x32xf32>
    %276 = math.tanh %275 : vector<2x32xf32>
    %277 = vector.extract_strided_slice %274 {offsets = [0, 0], sizes = [2, 32], strides = [1, 1]} : vector<2x96xf32> to vector<2x32xf32>
    %278 = vector.extract_strided_slice %274 {offsets = [0, 32], sizes = [2, 32], strides = [1, 1]} : vector<2x96xf32> to vector<2x32xf32>
    %279 = vector.extract_strided_slice %274 {offsets = [0, 64], sizes = [2, 32], strides = [1, 1]} : vector<2x96xf32> to vector<2x32xf32>
    %280 = arith.mulf %278, %263 : vector<2x32xf32>
    %281 = arith.mulf %277, %276 : vector<2x32xf32>
    %282 = arith.addf %280, %281 : vector<2x32xf32>
    %283 = math.tanh %282 : vector<2x32xf32>
    %284 = arith.mulf %279, %283 : vector<2x32xf32>
    %285 = vector.extract_strided_slice %168 {offsets = [12, 0], sizes = [2, 128], strides = [1, 1]} : vector<16x128xf32> to vector<2x128xf32>
    %cst_42 = arith.constant dense<0.000000e+00> : vector<2x128xf32>
    %286 = tpu.matmul %284, %3, %cst_42 {dimension_numbers = #tpu.dot_dimension_numbers<[1], [0], [0], [1], [0, 0, 1, 1], [], []>} : vector<2x32xf32>, vector<32x128xf32>, vector<2x128xf32> -> vector<2x128xf32>
    %287 = arith.addf %285, %286 : vector<2x128xf32>
    %288 = vector.extract_strided_slice %287 {offsets = [0, 0], sizes = [2, 96], strides = [1, 1]} : vector<2x128xf32> to vector<2x96xf32>
    %289 = arith.negf %288 : vector<2x96xf32>
    %290 = math.exp %289 : vector<2x96xf32>
    %cst_43 = arith.constant 1.000000e+00 : f32
    %291 = vector.broadcast %cst_43 : f32 to vector<2x96xf32>
    %292 = arith.addf %291, %290 : vector<2x96xf32>
    %293 = arith.divf %291, %292 : vector<2x96xf32>
    %294 = vector.extract_strided_slice %287 {offsets = [0, 96], sizes = [2, 32], strides = [1, 1]} : vector<2x128xf32> to vector<2x32xf32>
    %295 = math.tanh %294 : vector<2x32xf32>
    %296 = vector.extract_strided_slice %293 {offsets = [0, 0], sizes = [2, 32], strides = [1, 1]} : vector<2x96xf32> to vector<2x32xf32>
    %297 = vector.extract_strided_slice %293 {offsets = [0, 32], sizes = [2, 32], strides = [1, 1]} : vector<2x96xf32> to vector<2x32xf32>
    %298 = vector.extract_strided_slice %293 {offsets = [0, 64], sizes = [2, 32], strides = [1, 1]} : vector<2x96xf32> to vector<2x32xf32>
    %299 = arith.mulf %297, %282 : vector<2x32xf32>
    %300 = arith.mulf %296, %295 : vector<2x32xf32>
    %301 = arith.addf %299, %300 : vector<2x32xf32>
    %302 = math.tanh %301 : vector<2x32xf32>
    %303 = arith.mulf %298, %302 : vector<2x32xf32>
    %304 = vector.extract_strided_slice %168 {offsets = [14, 0], sizes = [2, 128], strides = [1, 1]} : vector<16x128xf32> to vector<2x128xf32>
    %cst_44 = arith.constant dense<0.000000e+00> : vector<2x128xf32>
    %305 = tpu.matmul %303, %3, %cst_44 {dimension_numbers = #tpu.dot_dimension_numbers<[1], [0], [0], [1], [0, 0, 1, 1], [], []>} : vector<2x32xf32>, vector<32x128xf32>, vector<2x128xf32> -> vector<2x128xf32>
    %306 = arith.addf %304, %305 : vector<2x128xf32>
    %307 = vector.extract_strided_slice %306 {offsets = [0, 0], sizes = [2, 96], strides = [1, 1]} : vector<2x128xf32> to vector<2x96xf32>
    %308 = arith.negf %307 : vector<2x96xf32>
    %309 = math.exp %308 : vector<2x96xf32>
    %cst_45 = arith.constant 1.000000e+00 : f32
    %310 = vector.broadcast %cst_45 : f32 to vector<2x96xf32>
    %311 = arith.addf %310, %309 : vector<2x96xf32>
    %312 = arith.divf %310, %311 : vector<2x96xf32>
    %313 = vector.extract_strided_slice %306 {offsets = [0, 96], sizes = [2, 32], strides = [1, 1]} : vector<2x128xf32> to vector<2x32xf32>
    %314 = math.tanh %313 : vector<2x32xf32>
    %315 = vector.extract_strided_slice %312 {offsets = [0, 0], sizes = [2, 32], strides = [1, 1]} : vector<2x96xf32> to vector<2x32xf32>
    %316 = vector.extract_strided_slice %312 {offsets = [0, 32], sizes = [2, 32], strides = [1, 1]} : vector<2x96xf32> to vector<2x32xf32>
    %317 = vector.extract_strided_slice %312 {offsets = [0, 64], sizes = [2, 32], strides = [1, 1]} : vector<2x96xf32> to vector<2x32xf32>
    %318 = arith.mulf %316, %301 : vector<2x32xf32>
    %319 = arith.mulf %315, %314 : vector<2x32xf32>
    %320 = arith.addf %318, %319 : vector<2x32xf32>
    %321 = math.tanh %320 : vector<2x32xf32>
    %322 = arith.mulf %317, %321 : vector<2x32xf32>
    %c0_46 = arith.constant 0 : index
    %c0_47 = arith.constant 0 : index
    %323 = vector.load %arg2[%c0_46, %c0_47] : memref<33x3xf32, #tpu.memory_space<vmem>>, vector<32x3xf32>
    %c32 = arith.constant 32 : index
    %c0_48 = arith.constant 0 : index
    %324 = vector.load %arg2[%c32, %c0_48] : memref<33x3xf32, #tpu.memory_space<vmem>>, vector<1x3xf32>
    %cst_49 = arith.constant dense<0.000000e+00> : vector<2x3xf32>
    %325 = tpu.matmul %322, %323, %cst_49 {dimension_numbers = #tpu.dot_dimension_numbers<[1], [0], [0], [1], [0, 0, 1, 1], [], []>} : vector<2x32xf32>, vector<32x3xf32>, vector<2x3xf32> -> vector<2x3xf32>
    %326 = vector.broadcast %324 : vector<1x3xf32> to vector<2x3xf32>
    %327 = arith.addf %325, %326 : vector<2x3xf32>
    %c0_50 = arith.constant 0 : index
    %c0_51 = arith.constant 0 : index
    %328 = vector.load %arg3[%c0_50, %c0_51] : memref<2x3xf32, #tpu.memory_space<vmem>>, vector<2x3xf32>
    tpu.vector_store %arg3[%c0_50, %c0_51], %327 {strides = array<i32>} : memref<2x3xf32, #tpu.memory_space<vmem>>, vector<2x3xf32>,
    return
  }
}

</mosaic_0001>

<llo_original>
// kernel: tpu_custom_call.1
$region0: #{tpu_custom_call.1}
  #allocation0 [shape = 'u32[]', space=smem, size = 0x4, offset = 0x4, fixed_abs, tag = 'smem constant byte address 0x4 - core index']
  #allocation1 [shape = 'u32[144,128]{1,0:T(1,128)}', space=vmem, size = 0x12000, scoped, tag = 'internal scratch']
  %s0 = inlined_call_operand.vmem [shape: f32[8,2,4], index: 0, kind: input, shape index: {}]
  %s1 = inlined_call_operand.hbm [shape: f32[102,128], index: 1, kind: input, shape index: {}]
  %s2 = inlined_call_operand.vmem [shape: f32[33,3], index: 2, kind: input, shape index: {}]
  %s3 = inlined_call_operand.hbm [shape: f32[2,3], index: 3, kind: output, shape index: {}]
  %s4 = sld [smem:[#allocation0]]
  $region26: #{tpu_custom_call.1} parent=0
    _
  %s6 = ssub.s32 1, %s4
  %s7 = scalar_select 0, %s6, %s4
  $region1: #{tpu_custom_call.1} parent=0
    #allocation2 [shape = 'u8[53248]{0}', space=vmem, size = 0xd000, scoped, tag = 'input window, operand 1, single buffered']
    #allocation3 [shape = 's32[1]{0}', space=sflag, size = 0x4, scoped, tag = 'scoped memory for tpu_custom_call.1']
    #allocation4 [shape = 's32[1]{0}', space=sflag, size = 0x4, scoped, tag = 'scoped memory for tpu_custom_call.1']
    #allocation5 [shape = 'u8[1024]{0}', space=vmem, size = 0x400, scoped, tag = 'output window, operand 0, single buffered']
    %8 = vsyncpa [#allocation3], 0
    %9 = vsyncpa [#allocation4], 0
    // Predicated region
    $region2: #{tpu_custom_call.1} parent=1 // pred_check
      _
    $region3: #{tpu_custom_call.1} parent=1 // pred_check_branch
      %11 = sbr.rel (0) target = $region5
    $region4: #{tpu_custom_call.1} parent=1 // pred_region
      _
    $region5: #{tpu_custom_call.1} parent=1 // pred_fallthru
      _
    // Predicated region
    $region6: #{tpu_custom_call.1} parent=1 // pred_check
      _
    $region7: #{tpu_custom_call.1} parent=1 // pred_check_branch
      %13 = sbr.rel (0) target = $region9
    $region8: #{tpu_custom_call.1} parent=1 // pred_region
      %s15 = ssub.s32 1664, 1664
      %16 = vsyncadd [#allocation3], %s15
      %s17 = sshll.u32 [#allocation2], 4
      %s18 = int_to_ptr.vmem [resolvable:$true] %s17
      %23 = dma.hbm_to_vmem [thread:$0]  %s1, 1664, %s18, [#allocation3], 128, 128, 8
    $region9: #{tpu_custom_call.1} parent=1 // pred_fallthru
      _
    // Predicated region
    $region10: #{tpu_custom_call.1} parent=1 // pred_check
      _
    $region11: #{tpu_custom_call.1} parent=1 // pred_check_branch
      %25 = sbr.rel (0) target = $region13
    $region12: #{tpu_custom_call.1} parent=1 // pred_region
      _
    $region13: #{tpu_custom_call.1} parent=1 // pred_fallthru
      _
    // Predicated region
    $region14: #{tpu_custom_call.1} parent=1 // pred_check
      _
    $region15: #{tpu_custom_call.1} parent=1 // pred_check_branch
      %27 = sbr.rel (0) target = $region17
    $region16: #{tpu_custom_call.1} parent=1 // pred_region
      %28 = dma.done [#allocation3], 1664
    $region17: #{tpu_custom_call.1} parent=1 // pred_fallthru
      _
    %v29 = vld [vmem:[#allocation2] sm:$0xf]
    %v30 = vld [vmem:[#allocation2 + $0x4] sm:$0xff]
    %v31 = vld [vmem:[#allocation2 + $0xc] sm:$0xff]
    %v32 = vld [vmem:[#allocation2 + $0x14] sm:$0xff]
    %v33 = vld [vmem:[#allocation2 + $0x1c] sm:$0xff]
    %v34 = vld [vmem:[#allocation2 + $0x24] sm:$0xff]
    %v35 = vld [vmem:[#allocation2 + $0x2c] sm:$0xff]
    %v36 = vld [vmem:[#allocation2 + $0x34] sm:$0xff]
    %v37 = vld [vmem:[#allocation2 + $0x3c] sm:$0xff]
    %v38 = vld [vmem:[#allocation2 + $0x44] sm:$0xff]
    %v39 = vld [vmem:[#allocation2 + $0x4c] sm:$0xff]
    %v40 = vld [vmem:[#allocation2 + $0x54] sm:$0xff]
    %v41 = vld [vmem:[#allocation2 + $0x5c] sm:$0xff]
    %v42 = vld [vmem:[#allocation2 + $0x64] sm:$0x1]
    %v43 = vld [vmem:[#allocation2 + $0x65] sm:$0x1]
    %v44 = vld [vmem:[%s0] sm:$0x3]
    %v45 = vld [vmem:[%s0 + $0x2] sm:$0x3]
    %v46 = vld [vmem:[%s0 + $0x4] sm:$0x3]
    %v47 = vld [vmem:[%s0 + $0x6] sm:$0x3]
    %v48 = vld [vmem:[%s0 + $0x8] sm:$0x3]
    %v49 = vld [vmem:[%s0 + $0xa] sm:$0x3]
    %v50 = vld [vmem:[%s0 + $0xc] sm:$0x3]
    %v51 = vld [vmem:[%s0 + $0xe] sm:$0x3]
    %v52 = vlaneseq
    %v53 = vshrl.u32 %v52, 7
    %v54 = vsub.s32 0, %v53
    %v55 = vrot.slane %v42, %v54
    %v64 = vcombine.low %v44, %v45
    %v65 = vcombine.low %v46, %v47
    %v67 = vunpack.c.l.s4 1983009808
    %v68 = vunpack.c.0.s8 %v67
    %v69 = vlaneseq
    %v70 = vshrl.u32 %v69, 7
    %v71 = vsub.s32 %v68, %v70
    %v72 = vrot.slane %v64, %v71
    %v74 = vunpack.c.l.s4 1983009808
    %v75 = vunpack.c.0.s8 %v74
    %v76 = vlaneseq
    %v77 = vshrl.u32 %v76, 7
    %v78 = vsub.s32 %v75, %v77
    %v79 = vrot.slane %v65, %v78
    %v80 = vcombine.low %v72, %v79
    %v81 = vcombine.low %v48, %v49
    %v82 = vcombine.low %v50, %v51
    %v84 = vunpack.c.l.s4 1983009808
    %v85 = vunpack.c.0.s8 %v84
    %v86 = vlaneseq
    %v87 = vshrl.u32 %v86, 7
    %v88 = vsub.s32 %v85, %v87
    %v89 = vrot.slane %v81, %v88
    %v91 = vunpack.c.l.s4 1983009808
    %v92 = vunpack.c.0.s8 %v91
    %v93 = vlaneseq
    %v94 = vshrl.u32 %v93, 7
    %v95 = vsub.s32 %v92, %v94
    %v96 = vrot.slane %v82, %v95
    %v97 = vcombine.low %v89, %v96
    %vm98 = vcmask 31744
    %v99 = vsel %vm98, %v80, 0
    %v101 = vsel %vm98, %v97, 0
    %vm103 = vcmask 1043456
    %v105 = vsel %vm103, %v29, 0
    %107 = vmatprep.subr.mxu0 0.0
    %108 = vmatpush1.msra.mxu0 %v105
    %109 = vmatprep.subr.mxu0 0.0
    %110 = vmatpush1.msra.mxu0 0.0
    %111 = vmatprep.subr.mxu0 0.0
    %112 = vmatpush1.msra.mxu0 0.0
    %113 = vmatprep.subr.mxu0 0.0
    %114 = vmatpush1.msra.mxu0 0.0
    %115 = vmatprep.subr.mxu0 0.0
    %116 = vmatpush1.msra.mxu0 0.0
    %117 = vmatprep.subr.mxu0 0.0
    %118 = vmatpush1.msra.mxu0 0.0
    %119 = vmatprep.subr.mxu0 0.0
    %120 = vmatpush1.msra.mxu0 0.0
    %121 = vmatprep.subr.mxu0 0.0
    %122 = vmatpush1.msra.mxu0 0.0
    %123 = vmatprep.subr.mxu0 0.0
    %124 = vmatpush1.msra.mxu0 0.0
    %125 = vmatprep.subr.mxu0 0.0
    %126 = vmatpush1.msra.mxu0 0.0
    %127 = vmatprep.subr.mxu0 0.0
    %128 = vmatpush1.msra.mxu0 0.0
    %129 = vmatprep.subr.mxu0 0.0
    %130 = vmatpush1.msra.mxu0 0.0
    %131 = vmatprep.subr.mxu0 0.0
    %132 = vmatpush1.msra.mxu0 0.0
    %133 = vmatprep.subr.mxu0 0.0
    %134 = vmatpush1.msra.mxu0 0.0
    %135 = vmatprep.subr.mxu0 0.0
    %136 = vmatpush1.msra.mxu0 0.0
    %137 = vmatprep.subr.mxu0 0.0
    %138 = vmatpush1.msra.mxu0 0.0
    %139 = vmatprep.subr.mxu0 0.0
    %140 = vmatpush1.msra.mxu0 0.0
    %141 = vmatprep.subr.mxu0 0.0
    %142 = vmatpush1.msra.mxu0 0.0
    %143 = vmatprep.subr.mxu0 0.0
    %144 = vmatpush1.msra.mxu0 0.0
    %145 = vmatprep.subr.mxu0 0.0
    %146 = vmatpush1.msra.mxu0 0.0
    %147 = vmatprep.subr.mxu0 0.0
    %148 = vmatpush1.msra.mxu0 0.0
    %149 = vmatprep.subr.mxu0 0.0
    %150 = vmatpush1.msra.mxu0 0.0
    %151 = vmatprep.subr.mxu0 0.0
    %152 = vmatpush1.msra.mxu0 0.0
    %153 = vmatprep.subr.mxu0 0.0
    %154 = vmatpush1.msra.mxu0 0.0
    %155 = vmatprep.subr.mxu0 0.0
    %156 = vmatpush1.msra.mxu0 0.0
    %157 = vmatprep.subr.mxu0 0.0
    %158 = vmatpush1.msra.mxu0 0.0
    %159 = vmatprep.subr.mxu0 0.0
    %160 = vmatpush1.msra.mxu0 0.0
    %161 = vmatprep.subr.mxu0 0.0
    %162 = vmatpush1.msra.mxu0 0.0
    %163 = vmatprep.subr.mxu0 0.0
    %164 = vmatpush1.msra.mxu0 0.0
    %165 = vmatprep.subr.mxu0 0.0
    %166 = vmatpush1.msra.mxu0 0.0
    %167 = vmatprep.subr.mxu0 0.0
    %168 = vmatpush1.msra.mxu0 0.0
    %169 = vmatprep.subr.mxu0 0.0
    %170 = vmatpush1.msra.mxu0 0.0
    %171 = vmatprep.mubr.f32.mxu0 0.0
    %172 = vmatmul.mubr.f32.gmra.mrb[0].mxu0 %v99
    %v173 = vpop.f32.mrb[0].mxu0
    %v174 = vadd.f32 %v55, %v173
    %v175 = vpop.f32.mrb[0].mxu0
    %176 = vmatprep.mubr.f32.mxu0 0.0
    %177 = vmatmul.mubr.f32.gmra.mrb[0].mxu0 %v101
    %v178 = vpop.f32.mrb[0].mxu0
    %v179 = vadd.f32 %v55, %v178
    %v180 = vpop.f32.mrb[0].mxu0
    %181 = vdwg.mxu0
    %vm182 = vcmask 261120
    %v184 = vsel %vm182, 0.0, 0
    %186 = vmatprep.subr.mxu0 0.0
    %187 = vmatpush1.msra.mxu0 %v30
    %188 = vmatprep.subr.mxu0 0.0
    %189 = vmatpush1.msra.mxu0 %v31
    %190 = vmatprep.subr.mxu0 0.0
    %191 = vmatpush1.msra.mxu0 %v32
    %192 = vmatprep.subr.mxu0 0.0
    %193 = vmatpush1.msra.mxu0 %v33
    %194 = vmatprep.subr.mxu0 0.0
    %195 = vmatpush1.msra.mxu0 0.0
    %196 = vmatprep.subr.mxu0 0.0
    %197 = vmatpush1.msra.mxu0 0.0
    %198 = vmatprep.subr.mxu0 0.0
    %199 = vmatpush1.msra.mxu0 0.0
    %200 = vmatprep.subr.mxu0 0.0
    %201 = vmatpush1.msra.mxu0 0.0
    %202 = vmatprep.subr.mxu0 0.0
    %203 = vmatpush1.msra.mxu0 0.0
    %204 = vmatprep.subr.mxu0 0.0
    %205 = vmatpush1.msra.mxu0 0.0
    %206 = vmatprep.subr.mxu0 0.0
    %207 = vmatpush1.msra.mxu0 0.0
    %208 = vmatprep.subr.mxu0 0.0
    %209 = vmatpush1.msra.mxu0 0.0
    %210 = vmatprep.subr.mxu0 0.0
    %211 = vmatpush1.msra.mxu0 0.0
    %212 = vmatprep.subr.mxu0 0.0
    %213 = vmatpush1.msra.mxu0 0.0
    %214 = vmatprep.subr.mxu0 0.0
    %215 = vmatpush1.msra.mxu0 0.0
    %216 = vmatprep.subr.mxu0 0.0
    %217 = vmatpush1.msra.mxu0 0.0
    %218 = vmatprep.subr.mxu0 0.0
    %219 = vmatpush1.msra.mxu0 0.0
    %220 = vmatprep.subr.mxu0 0.0
    %221 = vmatpush1.msra.mxu0 0.0
    %222 = vmatprep.subr.mxu0 0.0
    %223 = vmatpush1.msra.mxu0 0.0
    %224 = vmatprep.subr.mxu0 0.0
    %225 = vmatpush1.msra.mxu0 0.0
    %226 = vmatprep.subr.mxu0 0.0
    %227 = vmatpush1.msra.mxu0 0.0
    %228 = vmatprep.subr.mxu0 0.0
    %229 = vmatpush1.msra.mxu0 0.0
    %230 = vmatprep.subr.mxu0 0.0
    %231 = vmatpush1.msra.mxu0 0.0
    %232 = vmatprep.subr.mxu0 0.0
    %233 = vmatpush1.msra.mxu0 0.0
    %234 = vmatprep.subr.mxu0 0.0
    %235 = vmatpush1.msra.mxu0 0.0
    %236 = vmatprep.subr.mxu0 0.0
    %237 = vmatpush1.msra.mxu0 0.0
    %238 = vmatprep.subr.mxu0 0.0
    %239 = vmatpush1.msra.mxu0 0.0
    %240 = vmatprep.subr.mxu0 0.0
    %241 = vmatpush1.msra.mxu0 0.0
    %242 = vmatprep.subr.mxu0 0.0
    %243 = vmatpush1.msra.mxu0 0.0
    %244 = vmatprep.subr.mxu0 0.0
    %245 = vmatpush1.msra.mxu0 0.0
    %246 = vmatprep.subr.mxu0 0.0
    %247 = vmatpush1.msra.mxu0 0.0
    %248 = vmatprep.subr.mxu0 0.0
    %249 = vmatpush1.msra.mxu0 0.0
    %250 = vmatprep.mubr.f32.mxu0 0.0
    %251 = vmatmul.mubr.f32.gmra.mrb[0].mxu0 %v184
    %v252 = vpop.f32.mrb[0].mxu0
    %v253 = vadd.f32 0.0, %v252
    %v254 = vpop.f32.mrb[0].mxu0
    %255 = vdwg.mxu0
    %v256 = vadd.f32 %v174, %v253
    %v257 = vxor.u32 %v256, 2147483648
    %v258 = vmul.f32 %v257, 1.442695
    %v259 = vpow.pop %v258
    %v260 = vadd.f32 %v259, 1.0
    %v261 = vrcp.pop %v260
    %v262 = vmul.f32 1.0, %v261
    %v263 = vtanh.pop %v256
    %v264 = vmul.f32 %v262, 0.0
    %266 = vrot.lane.b32.xlu0 %v263, 32
    %v267 = vpop.permute.xlu0 %266
    %v269 = vmul.f32 %v262, %v267
    %271 = vrot.lane.b32.xlu0 %v269, 32
    %v272 = vpop.permute.xlu0 %271
    %v274 = vadd.f32 %v264, %v272
    %v275 = vtanh.pop %v274
    %277 = vrot.lane.b32.xlu0 %v275, 32
    %v278 = vpop.permute.xlu0 %277
    %v280 = vmul.f32 %v262, %v278
    %282 = vrot.lane.b32.xlu0 %v280, 64
    %v283 = vpop.permute.xlu0 %282
    %v284 = vsel %vm182, %v283, 0
    %286 = vmatprep.subr.mxu0 0.0
    %287 = vmatpush1.msra.mxu0 %v30
    %288 = vmatprep.subr.mxu0 0.0
    %289 = vmatpush1.msra.mxu0 %v31
    %290 = vmatprep.subr.mxu0 0.0
    %291 = vmatpush1.msra.mxu0 %v32
    %292 = vmatprep.subr.mxu0 0.0
    %293 = vmatpush1.msra.mxu0 %v33
    %294 = vmatprep.subr.mxu0 0.0
    %295 = vmatpush1.msra.mxu0 0.0
    %296 = vmatprep.subr.mxu0 0.0
    %297 = vmatpush1.msra.mxu0 0.0
    %298 = vmatprep.subr.mxu0 0.0
    %299 = vmatpush1.msra.mxu0 0.0
    %300 = vmatprep.subr.mxu0 0.0
    %301 = vmatpush1.msra.mxu0 0.0
    %302 = vmatprep.subr.mxu0 0.0
    %303 = vmatpush1.msra.mxu0 0.0
    %304 = vmatprep.subr.mxu0 0.0
    %305 = vmatpush1.msra.mxu0 0.0
    %306 = vmatprep.subr.mxu0 0.0
    %307 = vmatpush1.msra.mxu0 0.0
    %308 = vmatprep.subr.mxu0 0.0
    %309 = vmatpush1.msra.mxu0 0.0
    %310 = vmatprep.subr.mxu0 0.0
    %311 = vmatpush1.msra.mxu0 0.0
    %312 = vmatprep.subr.mxu0 0.0
    %313 = vmatpush1.msra.mxu0 0.0
    %314 = vmatprep.subr.mxu0 0.0
    %315 = vmatpush1.msra.mxu0 0.0
    %316 = vmatprep.subr.mxu0 0.0
    %317 = vmatpush1.msra.mxu0 0.0
    %318 = vmatprep.subr.mxu0 0.0
    %319 = vmatpush1.msra.mxu0 0.0
    %320 = vmatprep.subr.mxu0 0.0
    %321 = vmatpush1.msra.mxu0 0.0
    %322 = vmatprep.subr.mxu0 0.0
    %323 = vmatpush1.msra.mxu0 0.0
    %324 = vmatprep.subr.mxu0 0.0
    %325 = vmatpush1.msra.mxu0 0.0
    %326 = vmatprep.subr.mxu0 0.0
    %327 = vmatpush1.msra.mxu0 0.0
    %328 = vmatprep.subr.mxu0 0.0
    %329 = vmatpush1.msra.mxu0 0.0
    %330 = vmatprep.subr.mxu0 0.0
    %331 = vmatpush1.msra.mxu0 0.0
    %332 = vmatprep.subr.mxu0 0.0
    %333 = vmatpush1.msra.mxu0 0.0
    %334 = vmatprep.subr.mxu0 0.0
    %335 = vmatpush1.msra.mxu0 0.0
    %336 = vmatprep.subr.mxu0 0.0
    %337 = vmatpush1.msra.mxu0 0.0
    %338 = vmatprep.subr.mxu0 0.0
    %339 = vmatpush1.msra.mxu0 0.0
    %340 = vmatprep.subr.mxu0 0.0
    %341 = vmatpush1.msra.mxu0 0.0
    %342 = vmatprep.subr.mxu0 0.0
    %343 = vmatpush1.msra.mxu0 0.0
    %344 = vmatprep.subr.mxu0 0.0
    %345 = vmatpush1.msra.mxu0 0.0
    %346 = vmatprep.subr.mxu0 0.0
    %347 = vmatpush1.msra.mxu0 0.0
    %348 = vmatprep.subr.mxu0 0.0
    %349 = vmatpush1.msra.mxu0 0.0
    %350 = vmatprep.mubr.f32.mxu0 0.0
    %351 = vmatmul.mubr.f32.gmra.mrb[0].mxu0 %v284
    %v352 = vpop.f32.mrb[0].mxu0
    %v353 = vadd.f32 0.0, %v352
    %v354 = vpop.f32.mrb[0].mxu0
    %355 = vdwg.mxu0
    %v357 = vrot.slane %v353, 6
    %v359 = vadd.f32 %v174, %v357
    %v360 = vxor.u32 %v359, 2147483648
    %v361 = vmul.f32 %v360, 1.442695
    %v362 = vpow.pop %v361
    %v363 = vadd.f32 %v362, 1.0
    %v364 = vrcp.pop %v363
    %v365 = vmul.f32 1.0, %v364
    %v366 = vtanh.pop %v359
    %v368 = vrot.slane %v274, 6
    %v370 = vmul.f32 %v365, %v368
    %372 = vrot.lane.b32.xlu0 %v366, 32
    %v373 = vpop.permute.xlu0 %372
    %v375 = vmul.f32 %v365, %v373
    %377 = vrot.lane.b32.xlu0 %v375, 32
    %v378 = vpop.permute.xlu0 %377
    %v380 = vadd.f32 %v370, %v378
    %v381 = vtanh.pop %v380
    %383 = vrot.lane.b32.xlu0 %v381, 32
    %v384 = vpop.permute.xlu0 %383
    %v386 = vmul.f32 %v365, %v384
    %v388 = vrot.slane %v386, 2
    %389 = vrot.lane.b32.xlu0 %v388, 64
    %v390 = vpop.permute.xlu0 %389
    %v391 = vsel %vm182, %v390, 0
    %393 = vmatprep.subr.mxu0 0.0
    %394 = vmatpush1.msra.mxu0 %v30
    %395 = vmatprep.subr.mxu0 0.0
    %396 = vmatpush1.msra.mxu0 %v31
    %397 = vmatprep.subr.mxu0 0.0
    %398 = vmatpush1.msra.mxu0 %v32
    %399 = vmatprep.subr.mxu0 0.0
    %400 = vmatpush1.msra.mxu0 %v33
    %401 = vmatprep.subr.mxu0 0.0
    %402 = vmatpush1.msra.mxu0 0.0
    %403 = vmatprep.subr.mxu0 0.0
    %404 = vmatpush1.msra.mxu0 0.0
    %405 = vmatprep.subr.mxu0 0.0
    %406 = vmatpush1.msra.mxu0 0.0
    %407 = vmatprep.subr.mxu0 0.0
    %408 = vmatpush1.msra.mxu0 0.0
    %409 = vmatprep.subr.mxu0 0.0
    %410 = vmatpush1.msra.mxu0 0.0
    %411 = vmatprep.subr.mxu0 0.0
    %412 = vmatpush1.msra.mxu0 0.0
    %413 = vmatprep.subr.mxu0 0.0
    %414 = vmatpush1.msra.mxu0 0.0
    %415 = vmatprep.subr.mxu0 0.0
    %416 = vmatpush1.msra.mxu0 0.0
    %417 = vmatprep.subr.mxu0 0.0
    %418 = vmatpush1.msra.mxu0 0.0
    %419 = vmatprep.subr.mxu0 0.0
    %420 = vmatpush1.msra.mxu0 0.0
    %421 = vmatprep.subr.mxu0 0.0
    %422 = vmatpush1.msra.mxu0 0.0
    %423 = vmatprep.subr.mxu0 0.0
    %424 = vmatpush1.msra.mxu0 0.0
    %425 = vmatprep.subr.mxu0 0.0
    %426 = vmatpush1.msra.mxu0 0.0
    %427 = vmatprep.subr.mxu0 0.0
    %428 = vmatpush1.msra.mxu0 0.0
    %429 = vmatprep.subr.mxu0 0.0
    %430 = vmatpush1.msra.mxu0 0.0
    %431 = vmatprep.subr.mxu0 0.0
    %432 = vmatpush1.msra.mxu0 0.0
    %433 = vmatprep.subr.mxu0 0.0
    %434 = vmatpush1.msra.mxu0 0.0
    %435 = vmatprep.subr.mxu0 0.0
    %436 = vmatpush1.msra.mxu0 0.0
    %437 = vmatprep.subr.mxu0 0.0
    %438 = vmatpush1.msra.mxu0 0.0
    %439 = vmatprep.subr.mxu0 0.0
    %440 = vmatpush1.msra.mxu0 0.0
    %441 = vmatprep.subr.mxu0 0.0
    %442 = vmatpush1.msra.mxu0 0.0
    %443 = vmatprep.subr.mxu0 0.0
    %444 = vmatpush1.msra.mxu0 0.0
    %445 = vmatprep.subr.mxu0 0.0
    %446 = vmatpush1.msra.mxu0 0.0
    %447 = vmatprep.subr.mxu0 0.0
    %448 = vmatpush1.msra.mxu0 0.0
    %449 = vmatprep.subr.mxu0 0.0
    %450 = vmatpush1.msra.mxu0 0.0
    %451 = vmatprep.subr.mxu0 0.0
    %452 = vmatpush1.msra.mxu0 0.0
    %453 = vmatprep.subr.mxu0 0.0
    %454 = vmatpush1.msra.mxu0 0.0
    %455 = vmatprep.subr.mxu0 0.0
    %456 = vmatpush1.msra.mxu0 0.0
    %457 = vmatprep.mubr.f32.mxu0 0.0
    %458 = vmatmul.mubr.f32.gmra.mrb[0].mxu0 %v391
    %v459 = vpop.f32.mrb[0].mxu0
    %v460 = vadd.f32 0.0, %v459
    %v461 = vpop.f32.mrb[0].mxu0
    %462 = vdwg.mxu0
    %v464 = vrot.slane %v460, 4
    %v466 = vadd.f32 %v174, %v464
    %v467 = vxor.u32 %v466, 2147483648
    %v468 = vmul.f32 %v467, 1.442695
    %v469 = vpow.pop %v468
    %v470 = vadd.f32 %v469, 1.0
    %v471 = vrcp.pop %v470
    %v472 = vmul.f32 1.0, %v471
    %v473 = vtanh.pop %v466
    %v475 = vrot.slane %v380, 6
    %v477 = vmul.f32 %v472, %v475
    %479 = vrot.lane.b32.xlu0 %v473, 32
    %v480 = vpop.permute.xlu0 %479
    %v482 = vmul.f32 %v472, %v480
    %484 = vrot.lane.b32.xlu0 %v482, 32
    %v485 = vpop.permute.xlu0 %484
    %v487 = vadd.f32 %v477, %v485
    %v488 = vtanh.pop %v487
    %490 = vrot.lane.b32.xlu0 %v488, 32
    %v491 = vpop.permute.xlu0 %490
    %v493 = vmul.f32 %v472, %v491
    %v495 = vrot.slane %v493, 4
    %496 = vrot.lane.b32.xlu0 %v495, 64
    %v497 = vpop.permute.xlu0 %496
    %v498 = vsel %vm182, %v497, 0
    %500 = vmatprep.subr.mxu0 0.0
    %501 = vmatpush1.msra.mxu0 %v30
    %502 = vmatprep.subr.mxu0 0.0
    %503 = vmatpush1.msra.mxu0 %v31
    %504 = vmatprep.subr.mxu0 0.0
    %505 = vmatpush1.msra.mxu0 %v32
    %506 = vmatprep.subr.mxu0 0.0
    %507 = vmatpush1.msra.mxu0 %v33
    %508 = vmatprep.subr.mxu0 0.0
    %509 = vmatpush1.msra.mxu0 0.0
    %510 = vmatprep.subr.mxu0 0.0
    %511 = vmatpush1.msra.mxu0 0.0
    %512 = vmatprep.subr.mxu0 0.0
    %513 = vmatpush1.msra.mxu0 0.0
    %514 = vmatprep.subr.mxu0 0.0
    %515 = vmatpush1.msra.mxu0 0.0
    %516 = vmatprep.subr.mxu0 0.0
    %517 = vmatpush1.msra.mxu0 0.0
    %518 = vmatprep.subr.mxu0 0.0
    %519 = vmatpush1.msra.mxu0 0.0
    %520 = vmatprep.subr.mxu0 0.0
    %521 = vmatpush1.msra.mxu0 0.0
    %522 = vmatprep.subr.mxu0 0.0
    %523 = vmatpush1.msra.mxu0 0.0
    %524 = vmatprep.subr.mxu0 0.0
    %525 = vmatpush1.msra.mxu0 0.0
    %526 = vmatprep.subr.mxu0 0.0
    %527 = vmatpush1.msra.mxu0 0.0
    %528 = vmatprep.subr.mxu0 0.0
    %529 = vmatpush1.msra.mxu0 0.0
    %530 = vmatprep.subr.mxu0 0.0
    %531 = vmatpush1.msra.mxu0 0.0
    %532 = vmatprep.subr.mxu0 0.0
    %533 = vmatpush1.msra.mxu0 0.0
    %534 = vmatprep.subr.mxu0 0.0
    %535 = vmatpush1.msra.mxu0 0.0
    %536 = vmatprep.subr.mxu0 0.0
    %537 = vmatpush1.msra.mxu0 0.0
    %538 = vmatprep.subr.mxu0 0.0
    %539 = vmatpush1.msra.mxu0 0.0
    %540 = vmatprep.subr.mxu0 0.0
    %541 = vmatpush1.msra.mxu0 0.0
    %542 = vmatprep.subr.mxu0 0.0
    %543 = vmatpush1.msra.mxu0 0.0
    %544 = vmatprep.subr.mxu0 0.0
    %545 = vmatpush1.msra.mxu0 0.0
    %546 = vmatprep.subr.mxu0 0.0
    %547 = vmatpush1.msra.mxu0 0.0
    %548 = vmatprep.subr.mxu0 0.0
    %549 = vmatpush1.msra.mxu0 0.0
    %550 = vmatprep.subr.mxu0 0.0
    %551 = vmatpush1.msra.mxu0 0.0
    %552 = vmatprep.subr.mxu0 0.0
    %553 = vmatpush1.msra.mxu0 0.0
    %554 = vmatprep.subr.mxu0 0.0
    %555 = vmatpush1.msra.mxu0 0.0
    %556 = vmatprep.subr.mxu0 0.0
    %557 = vmatpush1.msra.mxu0 0.0
    %558 = vmatprep.subr.mxu0 0.0
    %559 = vmatpush1.msra.mxu0 0.0
    %560 = vmatprep.subr.mxu0 0.0
    %561 = vmatpush1.msra.mxu0 0.0
    %562 = vmatprep.subr.mxu0 0.0
    %563 = vmatpush1.msra.mxu0 0.0
    %564 = vmatprep.mubr.f32.mxu0 0.0
    %565 = vmatmul.mubr.f32.gmra.mrb[0].mxu0 %v498
    %v566 = vpop.f32.mrb[0].mxu0
    %v567 = vadd.f32 0.0, %v566
    %v568 = vpop.f32.mrb[0].mxu0
    %569 = vdwg.mxu0
    %v571 = vrot.slane %v567, 2
    %v573 = vadd.f32 %v174, %v571
    %v574 = vxor.u32 %v573, 2147483648
    %v575 = vmul.f32 %v574, 1.442695
    %v576 = vpow.pop %v575
    %v577 = vadd.f32 %v576, 1.0
    %v578 = vrcp.pop %v577
    %v579 = vmul.f32 1.0, %v578
    %v580 = vtanh.pop %v573
    %v582 = vrot.slane %v487, 6
    %v584 = vmul.f32 %v579, %v582
    %586 = vrot.lane.b32.xlu0 %v580, 32
    %v587 = vpop.permute.xlu0 %586
    %v589 = vmul.f32 %v579, %v587
    %591 = vrot.lane.b32.xlu0 %v589, 32
    %v592 = vpop.permute.xlu0 %591
    %v594 = vadd.f32 %v584, %v592
    %v595 = vtanh.pop %v594
    %597 = vrot.lane.b32.xlu0 %v595, 32
    %v598 = vpop.permute.xlu0 %597
    %v600 = vmul.f32 %v579, %v598
    %v602 = vrot.slane %v600, 6
    %603 = vrot.lane.b32.xlu0 %v602, 64
    %v604 = vpop.permute.xlu0 %603
    %v605 = vsel %vm182, %v604, 0
    %607 = vmatprep.subr.mxu0 0.0
    %608 = vmatpush1.msra.mxu0 %v30
    %609 = vmatprep.subr.mxu0 0.0
    %610 = vmatpush1.msra.mxu0 %v31
    %611 = vmatprep.subr.mxu0 0.0
    %612 = vmatpush1.msra.mxu0 %v32
    %613 = vmatprep.subr.mxu0 0.0
    %614 = vmatpush1.msra.mxu0 %v33
    %615 = vmatprep.subr.mxu0 0.0
    %616 = vmatpush1.msra.mxu0 0.0
    %617 = vmatprep.subr.mxu0 0.0
    %618 = vmatpush1.msra.mxu0 0.0
    %619 = vmatprep.subr.mxu0 0.0
    %620 = vmatpush1.msra.mxu0 0.0
    %621 = vmatprep.subr.mxu0 0.0
    %622 = vmatpush1.msra.mxu0 0.0
    %623 = vmatprep.subr.mxu0 0.0
    %624 = vmatpush1.msra.mxu0 0.0
    %625 = vmatprep.subr.mxu0 0.0
    %626 = vmatpush1.msra.mxu0 0.0
    %627 = vmatprep.subr.mxu0 0.0
    %628 = vmatpush1.msra.mxu0 0.0
    %629 = vmatprep.subr.mxu0 0.0
    %630 = vmatpush1.msra.mxu0 0.0
    %631 = vmatprep.subr.mxu0 0.0
    %632 = vmatpush1.msra.mxu0 0.0
    %633 = vmatprep.subr.mxu0 0.0
    %634 = vmatpush1.msra.mxu0 0.0
    %635 = vmatprep.subr.mxu0 0.0
    %636 = vmatpush1.msra.mxu0 0.0
    %637 = vmatprep.subr.mxu0 0.0
    %638 = vmatpush1.msra.mxu0 0.0
    %639 = vmatprep.subr.mxu0 0.0
    %640 = vmatpush1.msra.mxu0 0.0
    %641 = vmatprep.subr.mxu0 0.0
    %642 = vmatpush1.msra.mxu0 0.0
    %643 = vmatprep.subr.mxu0 0.0
    %644 = vmatpush1.msra.mxu0 0.0
    %645 = vmatprep.subr.mxu0 0.0
    %646 = vmatpush1.msra.mxu0 0.0
    %647 = vmatprep.subr.mxu0 0.0
    %648 = vmatpush1.msra.mxu0 0.0
    %649 = vmatprep.subr.mxu0 0.0
    %650 = vmatpush1.msra.mxu0 0.0
    %651 = vmatprep.subr.mxu0 0.0
    %652 = vmatpush1.msra.mxu0 0.0
    %653 = vmatprep.subr.mxu0 0.0
    %654 = vmatpush1.msra.mxu0 0.0
    %655 = vmatprep.subr.mxu0 0.0
    %656 = vmatpush1.msra.mxu0 0.0
    %657 = vmatprep.subr.mxu0 0.0
    %658 = vmatpush1.msra.mxu0 0.0
    %659 = vmatprep.subr.mxu0 0.0
    %660 = vmatpush1.msra.mxu0 0.0
    %661 = vmatprep.subr.mxu0 0.0
    %662 = vmatpush1.msra.mxu0 0.0
    %663 = vmatprep.subr.mxu0 0.0
    %664 = vmatpush1.msra.mxu0 0.0
    %665 = vmatprep.subr.mxu0 0.0
    %666 = vmatpush1.msra.mxu0 0.0
    %667 = vmatprep.subr.mxu0 0.0
    %668 = vmatpush1.msra.mxu0 0.0
    %669 = vmatprep.subr.mxu0 0.0
    %670 = vmatpush1.msra.mxu0 0.0
    %671 = vmatprep.mubr.f32.mxu0 0.0
    %672 = vmatmul.mubr.f32.gmra.mrb[0].mxu0 %v605
    %v673 = vpop.f32.mrb[0].mxu0
    %v674 = vadd.f32 0.0, %v673
    %v675 = vpop.f32.mrb[0].mxu0
    %676 = vdwg.mxu0
    %v677 = vadd.f32 %v179, %v674
    %v678 = vxor.u32 %v677, 2147483648
    %v679 = vmul.f32 %v678, 1.442695
    %v680 = vpow.pop %v679
    %v681 = vadd.f32 %v680, 1.0
    %v682 = vrcp.pop %v681
    %v683 = vmul.f32 1.0, %v682
    %v684 = vtanh.pop %v677
    %v686 = vrot.slane %v594, 6
    %v688 = vmul.f32 %v683, %v686
    %690 = vrot.lane.b32.xlu0 %v684, 32
    %v691 = vpop.permute.xlu0 %690
    %v693 = vmul.f32 %v683, %v691
    %695 = vrot.lane.b32.xlu0 %v693, 32
    %v696 = vpop.permute.xlu0 %695
    %v698 = vadd.f32 %v688, %v696
    %v699 = vtanh.pop %v698
    %701 = vrot.lane.b32.xlu0 %v699, 32
    %v702 = vpop.permute.xlu0 %701
    %v704 = vmul.f32 %v683, %v702
    %706 = vrot.lane.b32.xlu0 %v704, 64
    %v707 = vpop.permute.xlu0 %706
    %v708 = vsel %vm182, %v707, 0
    %710 = vmatprep.subr.mxu0 0.0
    %711 = vmatpush1.msra.mxu0 %v30
    %712 = vmatprep.subr.mxu0 0.0
    %713 = vmatpush1.msra.mxu0 %v31
    %714 = vmatprep.subr.mxu0 0.0
    %715 = vmatpush1.msra.mxu0 %v32
    %716 = vmatprep.subr.mxu0 0.0
    %717 = vmatpush1.msra.mxu0 %v33
    %718 = vmatprep.subr.mxu0 0.0
    %719 = vmatpush1.msra.mxu0 0.0
    %720 = vmatprep.subr.mxu0 0.0
    %721 = vmatpush1.msra.mxu0 0.0
    %722 = vmatprep.subr.mxu0 0.0
    %723 = vmatpush1.msra.mxu0 0.0
    %724 = vmatprep.subr.mxu0 0.0
    %725 = vmatpush1.msra.mxu0 0.0
    %726 = vmatprep.subr.mxu0 0.0
    %727 = vmatpush1.msra.mxu0 0.0
    %728 = vmatprep.subr.mxu0 0.0
    %729 = vmatpush1.msra.mxu0 0.0
    %730 = vmatprep.subr.mxu0 0.0
    %731 = vmatpush1.msra.mxu0 0.0
    %732 = vmatprep.subr.mxu0 0.0
    %733 = vmatpush1.msra.mxu0 0.0
    %734 = vmatprep.subr.mxu0 0.0
    %735 = vmatpush1.msra.mxu0 0.0
    %736 = vmatprep.subr.mxu0 0.0
    %737 = vmatpush1.msra.mxu0 0.0
    %738 = vmatprep.subr.mxu0 0.0
    %739 = vmatpush1.msra.mxu0 0.0
    %740 = vmatprep.subr.mxu0 0.0
    %741 = vmatpush1.msra.mxu0 0.0
    %742 = vmatprep.subr.mxu0 0.0
    %743 = vmatpush1.msra.mxu0 0.0
    %744 = vmatprep.subr.mxu0 0.0
    %745 = vmatpush1.msra.mxu0 0.0
    %746 = vmatprep.subr.mxu0 0.0
    %747 = vmatpush1.msra.mxu0 0.0
    %748 = vmatprep.subr.mxu0 0.0
    %749 = vmatpush1.msra.mxu0 0.0
    %750 = vmatprep.subr.mxu0 0.0
    %751 = vmatpush1.msra.mxu0 0.0
    %752 = vmatprep.subr.mxu0 0.0
    %753 = vmatpush1.msra.mxu0 0.0
    %754 = vmatprep.subr.mxu0 0.0
    %755 = vmatpush1.msra.mxu0 0.0
    %756 = vmatprep.subr.mxu0 0.0
    %757 = vmatpush1.msra.mxu0 0.0
    %758 = vmatprep.subr.mxu0 0.0
    %759 = vmatpush1.msra.mxu0 0.0
    %760 = vmatprep.subr.mxu0 0.0
    %761 = vmatpush1.msra.mxu0 0.0
    %762 = vmatprep.subr.mxu0 0.0
    %763 = vmatpush1.msra.mxu0 0.0
    %764 = vmatprep.subr.mxu0 0.0
    %765 = vmatpush1.msra.mxu0 0.0
    %766 = vmatprep.subr.mxu0 0.0
    %767 = vmatpush1.msra.mxu0 0.0
    %768 = vmatprep.subr.mxu0 0.0
    %769 = vmatpush1.msra.mxu0 0.0
    %770 = vmatprep.subr.mxu0 0.0
    %771 = vmatpush1.msra.mxu0 0.0
    %772 = vmatprep.subr.mxu0 0.0
    %773 = vmatpush1.msra.mxu0 0.0
    %774 = vmatprep.mubr.f32.mxu0 0.0
    %775 = vmatmul.mubr.f32.gmra.mrb[0].mxu0 %v708
    %v776 = vpop.f32.mrb[0].mxu0
    %v777 = vadd.f32 0.0, %v776
    %v778 = vpop.f32.mrb[0].mxu0
    %779 = vdwg.mxu0
    %v781 = vrot.slane %v777, 6
    %v783 = vadd.f32 %v179, %v781
    %v784 = vxor.u32 %v783, 2147483648
    %v785 = vmul.f32 %v784, 1.442695
    %v786 = vpow.pop %v785
    %v787 = vadd.f32 %v786, 1.0
    %v788 = vrcp.pop %v787
    %v789 = vmul.f32 1.0, %v788
    %v790 = vtanh.pop %v783
    %v792 = vrot.slane %v698, 6
    %v794 = vmul.f32 %v789, %v792
    %796 = vrot.lane.b32.xlu0 %v790, 32
    %v797 = vpop.permute.xlu0 %796
    %v799 = vmul.f32 %v789, %v797
    %801 = vrot.lane.b32.xlu0 %v799, 32
    %v802 = vpop.permute.xlu0 %801
    %v804 = vadd.f32 %v794, %v802
    %v805 = vtanh.pop %v804
    %807 = vrot.lane.b32.xlu0 %v805, 32
    %v808 = vpop.permute.xlu0 %807
    %v810 = vmul.f32 %v789, %v808
    %v812 = vrot.slane %v810, 2
    %813 = vrot.lane.b32.xlu0 %v812, 64
    %v814 = vpop.permute.xlu0 %813
    %v815 = vsel %vm182, %v814, 0
    %817 = vmatprep.subr.mxu0 0.0
    %818 = vmatpush1.msra.mxu0 %v30
    %819 = vmatprep.subr.mxu0 0.0
    %820 = vmatpush1.msra.mxu0 %v31
    %821 = vmatprep.subr.mxu0 0.0
    %822 = vmatpush1.msra.mxu0 %v32
    %823 = vmatprep.subr.mxu0 0.0
    %824 = vmatpush1.msra.mxu0 %v33
    %825 = vmatprep.subr.mxu0 0.0
    %826 = vmatpush1.msra.mxu0 0.0
    %827 = vmatprep.subr.mxu0 0.0
    %828 = vmatpush1.msra.mxu0 0.0
    %829 = vmatprep.subr.mxu0 0.0
    %830 = vmatpush1.msra.mxu0 0.0
    %831 = vmatprep.subr.mxu0 0.0
    %832 = vmatpush1.msra.mxu0 0.0
    %833 = vmatprep.subr.mxu0 0.0
    %834 = vmatpush1.msra.mxu0 0.0
    %835 = vmatprep.subr.mxu0 0.0
    %836 = vmatpush1.msra.mxu0 0.0
    %837 = vmatprep.subr.mxu0 0.0
    %838 = vmatpush1.msra.mxu0 0.0
    %839 = vmatprep.subr.mxu0 0.0
    %840 = vmatpush1.msra.mxu0 0.0
    %841 = vmatprep.subr.mxu0 0.0
    %842 = vmatpush1.msra.mxu0 0.0
    %843 = vmatprep.subr.mxu0 0.0
    %844 = vmatpush1.msra.mxu0 0.0
    %845 = vmatprep.subr.mxu0 0.0
    %846 = vmatpush1.msra.mxu0 0.0
    %847 = vmatprep.subr.mxu0 0.0
    %848 = vmatpush1.msra.mxu0 0.0
    %849 = vmatprep.subr.mxu0 0.0
    %850 = vmatpush1.msra.mxu0 0.0
    %851 = vmatprep.subr.mxu0 0.0
    %852 = vmatpush1.msra.mxu0 0.0
    %853 = vmatprep.subr.mxu0 0.0
    %854 = vmatpush1.msra.mxu0 0.0
    %855 = vmatprep.subr.mxu0 0.0
    %856 = vmatpush1.msra.mxu0 0.0
    %857 = vmatprep.subr.mxu0 0.0
    %858 = vmatpush1.msra.mxu0 0.0
    %859 = vmatprep.subr.mxu0 0.0
    %860 = vmatpush1.msra.mxu0 0.0
    %861 = vmatprep.subr.mxu0 0.0
    %862 = vmatpush1.msra.mxu0 0.0
    %863 = vmatprep.subr.mxu0 0.0
    %864 = vmatpush1.msra.mxu0 0.0
    %865 = vmatprep.subr.mxu0 0.0
    %866 = vmatpush1.msra.mxu0 0.0
    %867 = vmatprep.subr.mxu0 0.0
    %868 = vmatpush1.msra.mxu0 0.0
    %869 = vmatprep.subr.mxu0 0.0
    %870 = vmatpush1.msra.mxu0 0.0
    %871 = vmatprep.subr.mxu0 0.0
    %872 = vmatpush1.msra.mxu0 0.0
    %873 = vmatprep.subr.mxu0 0.0
    %874 = vmatpush1.msra.mxu0 0.0
    %875 = vmatprep.subr.mxu0 0.0
    %876 = vmatpush1.msra.mxu0 0.0
    %877 = vmatprep.subr.mxu0 0.0
    %878 = vmatpush1.msra.mxu0 0.0
    %879 = vmatprep.subr.mxu0 0.0
    %880 = vmatpush1.msra.mxu0 0.0
    %881 = vmatprep.mubr.f32.mxu0 0.0
    %882 = vmatmul.mubr.f32.gmra.mrb[0].mxu0 %v815
    %v883 = vpop.f32.mrb[0].mxu0
    %v884 = vadd.f32 0.0, %v883
    %v885 = vpop.f32.mrb[0].mxu0
    %886 = vdwg.mxu0
    %v888 = vrot.slane %v884, 4
    %v890 = vadd.f32 %v179, %v888
    %v891 = vxor.u32 %v890, 2147483648
    %v892 = vmul.f32 %v891, 1.442695
    %v893 = vpow.pop %v892
    %v894 = vadd.f32 %v893, 1.0
    %v895 = vrcp.pop %v894
    %v896 = vmul.f32 1.0, %v895
    %v897 = vtanh.pop %v890
    %v899 = vrot.slane %v804, 6
    %v901 = vmul.f32 %v896, %v899
    %903 = vrot.lane.b32.xlu0 %v897, 32
    %v904 = vpop.permute.xlu0 %903
    %v906 = vmul.f32 %v896, %v904
    %908 = vrot.lane.b32.xlu0 %v906, 32
    %v909 = vpop.permute.xlu0 %908
    %v911 = vadd.f32 %v901, %v909
    %v912 = vtanh.pop %v911
    %914 = vrot.lane.b32.xlu0 %v912, 32
    %v915 = vpop.permute.xlu0 %914
    %v917 = vmul.f32 %v896, %v915
    %v919 = vrot.slane %v917, 4
    %920 = vrot.lane.b32.xlu0 %v919, 64
    %v921 = vpop.permute.xlu0 %920
    %v922 = vsel %vm182, %v921, 0
    %924 = vmatprep.subr.mxu0 0.0
    %925 = vmatpush1.msra.mxu0 %v30
    %926 = vmatprep.subr.mxu0 0.0
    %927 = vmatpush1.msra.mxu0 %v31
    %928 = vmatprep.subr.mxu0 0.0
    %929 = vmatpush1.msra.mxu0 %v32
    %930 = vmatprep.subr.mxu0 0.0
    %931 = vmatpush1.msra.mxu0 %v33
    %932 = vmatprep.subr.mxu0 0.0
    %933 = vmatpush1.msra.mxu0 0.0
    %934 = vmatprep.subr.mxu0 0.0
    %935 = vmatpush1.msra.mxu0 0.0
    %936 = vmatprep.subr.mxu0 0.0
    %937 = vmatpush1.msra.mxu0 0.0
    %938 = vmatprep.subr.mxu0 0.0
    %939 = vmatpush1.msra.mxu0 0.0
    %940 = vmatprep.subr.mxu0 0.0
    %941 = vmatpush1.msra.mxu0 0.0
    %942 = vmatprep.subr.mxu0 0.0
    %943 = vmatpush1.msra.mxu0 0.0
    %944 = vmatprep.subr.mxu0 0.0
    %945 = vmatpush1.msra.mxu0 0.0
    %946 = vmatprep.subr.mxu0 0.0
    %947 = vmatpush1.msra.mxu0 0.0
    %948 = vmatprep.subr.mxu0 0.0
    %949 = vmatpush1.msra.mxu0 0.0
    %950 = vmatprep.subr.mxu0 0.0
    %951 = vmatpush1.msra.mxu0 0.0
    %952 = vmatprep.subr.mxu0 0.0
    %953 = vmatpush1.msra.mxu0 0.0
    %954 = vmatprep.subr.mxu0 0.0
    %955 = vmatpush1.msra.mxu0 0.0
    %956 = vmatprep.subr.mxu0 0.0
    %957 = vmatpush1.msra.mxu0 0.0
    %958 = vmatprep.subr.mxu0 0.0
    %959 = vmatpush1.msra.mxu0 0.0
    %960 = vmatprep.subr.mxu0 0.0
    %961 = vmatpush1.msra.mxu0 0.0
    %962 = vmatprep.subr.mxu0 0.0
    %963 = vmatpush1.msra.mxu0 0.0
    %964 = vmatprep.subr.mxu0 0.0
    %965 = vmatpush1.msra.mxu0 0.0
    %966 = vmatprep.subr.mxu0 0.0
    %967 = vmatpush1.msra.mxu0 0.0
    %968 = vmatprep.subr.mxu0 0.0
    %969 = vmatpush1.msra.mxu0 0.0
    %970 = vmatprep.subr.mxu0 0.0
    %971 = vmatpush1.msra.mxu0 0.0
    %972 = vmatprep.subr.mxu0 0.0
    %973 = vmatpush1.msra.mxu0 0.0
    %974 = vmatprep.subr.mxu0 0.0
    %975 = vmatpush1.msra.mxu0 0.0
    %976 = vmatprep.subr.mxu0 0.0
    %977 = vmatpush1.msra.mxu0 0.0
    %978 = vmatprep.subr.mxu0 0.0
    %979 = vmatpush1.msra.mxu0 0.0
    %980 = vmatprep.subr.mxu0 0.0
    %981 = vmatpush1.msra.mxu0 0.0
    %982 = vmatprep.subr.mxu0 0.0
    %983 = vmatpush1.msra.mxu0 0.0
    %984 = vmatprep.subr.mxu0 0.0
    %985 = vmatpush1.msra.mxu0 0.0
    %986 = vmatprep.subr.mxu0 0.0
    %987 = vmatpush1.msra.mxu0 0.0
    %988 = vmatprep.mubr.f32.mxu0 0.0
    %989 = vmatmul.mubr.f32.gmra.mrb[0].mxu0 %v922
    %v990 = vpop.f32.mrb[0].mxu0
    %v991 = vadd.f32 0.0, %v990
    %v992 = vpop.f32.mrb[0].mxu0
    %993 = vdwg.mxu0
    %v995 = vrot.slane %v991, 2
    %v997 = vadd.f32 %v179, %v995
    %v998 = vxor.u32 %v997, 2147483648
    %v999 = vmul.f32 %v998, 1.442695
    %v1000 = vpow.pop %v999
    %v1001 = vadd.f32 %v1000, 1.0
    %v1002 = vrcp.pop %v1001
    %v1003 = vmul.f32 1.0, %v1002
    %v1004 = vtanh.pop %v997
    %v1006 = vrot.slane %v911, 6
    %v1008 = vmul.f32 %v1003, %v1006
    %1010 = vrot.lane.b32.xlu0 %v1004, 32
    %v1011 = vpop.permute.xlu0 %1010
    %v1013 = vmul.f32 %v1003, %v1011
    %1015 = vrot.lane.b32.xlu0 %v1013, 32
    %v1016 = vpop.permute.xlu0 %1015
    %v1018 = vadd.f32 %v1008, %v1016
    %v1019 = vtanh.pop %v1018
    %1021 = vrot.lane.b32.xlu0 %v1019, 32
    %v1022 = vpop.permute.xlu0 %1021
    %v1024 = vmul.f32 %v1003, %v1022
    %vm1025 = vcmask 1041408
    %v1026 = vsel %vm1025, %v280, %v386
    %v1027 = vsel %vm103, %v1026, %v493
    %vm1028 = vcmask 1045504
    %v1029 = vsel %vm1028, %v1027, %v600
    %v1030 = vsel %vm1025, %v704, %v810
    %v1031 = vsel %vm103, %v1030, %v917
    %v1032 = vsel %vm1028, %v1031, %v1024
    %v1033 = vlaneseq
    %v1034 = vshrl.u32 %v1033, 7
    %v1035 = vsub.s32 0, %v1034
    %v1036 = vrot.slane %v43, %v1035
    %1039 = vrot.lane.b32.xlu0 %v1029, 64
    %v1040 = vpop.permute.xlu0 %1039
    %1041 = vrot.lane.b32.xlu0 %v1032, 64
    %v1042 = vpop.permute.xlu0 %1041
    %v1043 = vsel %vm182, %v1040, 0
    %v1045 = vsel %vm182, %v1042, 0
    %1047 = vmatprep.subr.mxu0 0.0
    %1048 = vmatpush1.msra.mxu0 %v34
    %1049 = vmatprep.subr.mxu0 0.0
    %1050 = vmatpush1.msra.mxu0 %v35
    %1051 = vmatprep.subr.mxu0 0.0
    %1052 = vmatpush1.msra.mxu0 %v36
    %1053 = vmatprep.subr.mxu0 0.0
    %1054 = vmatpush1.msra.mxu0 %v37
    %1055 = vmatprep.subr.mxu0 0.0
    %1056 = vmatpush1.msra.mxu0 0.0
    %1057 = vmatprep.subr.mxu0 0.0
    %1058 = vmatpush1.msra.mxu0 0.0
    %1059 = vmatprep.subr.mxu0 0.0
    %1060 = vmatpush1.msra.mxu0 0.0
    %1061 = vmatprep.subr.mxu0 0.0
    %1062 = vmatpush1.msra.mxu0 0.0
    %1063 = vmatprep.subr.mxu0 0.0
    %1064 = vmatpush1.msra.mxu0 0.0
    %1065 = vmatprep.subr.mxu0 0.0
    %1066 = vmatpush1.msra.mxu0 0.0
    %1067 = vmatprep.subr.mxu0 0.0
    %1068 = vmatpush1.msra.mxu0 0.0
    %1069 = vmatprep.subr.mxu0 0.0
    %1070 = vmatpush1.msra.mxu0 0.0
    %1071 = vmatprep.subr.mxu0 0.0
    %1072 = vmatpush1.msra.mxu0 0.0
    %1073 = vmatprep.subr.mxu0 0.0
    %1074 = vmatpush1.msra.mxu0 0.0
    %1075 = vmatprep.subr.mxu0 0.0
    %1076 = vmatpush1.msra.mxu0 0.0
    %1077 = vmatprep.subr.mxu0 0.0
    %1078 = vmatpush1.msra.mxu0 0.0
    %1079 = vmatprep.subr.mxu0 0.0
    %1080 = vmatpush1.msra.mxu0 0.0
    %1081 = vmatprep.subr.mxu0 0.0
    %1082 = vmatpush1.msra.mxu0 0.0
    %1083 = vmatprep.subr.mxu0 0.0
    %1084 = vmatpush1.msra.mxu0 0.0
    %1085 = vmatprep.subr.mxu0 0.0
    %1086 = vmatpush1.msra.mxu0 0.0
    %1087 = vmatprep.subr.mxu0 0.0
    %1088 = vmatpush1.msra.mxu0 0.0
    %1089 = vmatprep.subr.mxu0 0.0
    %1090 = vmatpush1.msra.mxu0 0.0
    %1091 = vmatprep.subr.mxu0 0.0
    %1092 = vmatpush1.msra.mxu0 0.0
    %1093 = vmatprep.subr.mxu0 0.0
    %1094 = vmatpush1.msra.mxu0 0.0
    %1095 = vmatprep.subr.mxu0 0.0
    %1096 = vmatpush1.msra.mxu0 0.0
    %1097 = vmatprep.subr.mxu0 0.0
    %1098 = vmatpush1.msra.mxu0 0.0
    %1099 = vmatprep.subr.mxu0 0.0
    %1100 = vmatpush1.msra.mxu0 0.0
    %1101 = vmatprep.subr.mxu0 0.0
    %1102 = vmatpush1.msra.mxu0 0.0
    %1103 = vmatprep.subr.mxu0 0.0
    %1104 = vmatpush1.msra.mxu0 0.0
    %1105 = vmatprep.subr.mxu0 0.0
    %1106 = vmatpush1.msra.mxu0 0.0
    %1107 = vmatprep.subr.mxu0 0.0
    %1108 = vmatpush1.msra.mxu0 0.0
    %1109 = vmatprep.subr.mxu0 0.0
    %1110 = vmatpush1.msra.mxu0 0.0
    %1111 = vmatprep.mubr.f32.mxu0 0.0
    %1112 = vmatmul.mubr.f32.gmra.mrb[0].mxu0 %v1043
    %v1113 = vpop.f32.mrb[0].mxu0
    %v1114 = vadd.f32 %v1036, %v1113
    %v1115 = vpop.f32.mrb[0].mxu0
    %1116 = vmatprep.mubr.f32.mxu0 0.0
    %1117 = vmatmul.mubr.f32.gmra.mrb[0].mxu0 %v1045
    %v1118 = vpop.f32.mrb[0].mxu0
    %v1119 = vadd.f32 %v1036, %v1118
    %v1120 = vpop.f32.mrb[0].mxu0
    %1121 = vdwg.mxu0
    %1122 = vmatprep.subr.mxu0 0.0
    %1123 = vmatpush1.msra.mxu0 %v38
    %1124 = vmatprep.subr.mxu0 0.0
    %1125 = vmatpush1.msra.mxu0 %v39
    %1126 = vmatprep.subr.mxu0 0.0
    %1127 = vmatpush1.msra.mxu0 %v40
    %1128 = vmatprep.subr.mxu0 0.0
    %1129 = vmatpush1.msra.mxu0 %v41
    %1130 = vmatprep.subr.mxu0 0.0
    %1131 = vmatpush1.msra.mxu0 0.0
    %1132 = vmatprep.subr.mxu0 0.0
    %1133 = vmatpush1.msra.mxu0 0.0
    %1134 = vmatprep.subr.mxu0 0.0
    %1135 = vmatpush1.msra.mxu0 0.0
    %1136 = vmatprep.subr.mxu0 0.0
    %1137 = vmatpush1.msra.mxu0 0.0
    %1138 = vmatprep.subr.mxu0 0.0
    %1139 = vmatpush1.msra.mxu0 0.0
    %1140 = vmatprep.subr.mxu0 0.0
    %1141 = vmatpush1.msra.mxu0 0.0
    %1142 = vmatprep.subr.mxu0 0.0
    %1143 = vmatpush1.msra.mxu0 0.0
    %1144 = vmatprep.subr.mxu0 0.0
    %1145 = vmatpush1.msra.mxu0 0.0
    %1146 = vmatprep.subr.mxu0 0.0
    %1147 = vmatpush1.msra.mxu0 0.0
    %1148 = vmatprep.subr.mxu0 0.0
    %1149 = vmatpush1.msra.mxu0 0.0
    %1150 = vmatprep.subr.mxu0 0.0
    %1151 = vmatpush1.msra.mxu0 0.0
    %1152 = vmatprep.subr.mxu0 0.0
    %1153 = vmatpush1.msra.mxu0 0.0
    %1154 = vmatprep.subr.mxu0 0.0
    %1155 = vmatpush1.msra.mxu0 0.0
    %1156 = vmatprep.subr.mxu0 0.0
    %1157 = vmatpush1.msra.mxu0 0.0
    %1158 = vmatprep.subr.mxu0 0.0
    %1159 = vmatpush1.msra.mxu0 0.0
    %1160 = vmatprep.subr.mxu0 0.0
    %1161 = vmatpush1.msra.mxu0 0.0
    %1162 = vmatprep.subr.mxu0 0.0
    %1163 = vmatpush1.msra.mxu0 0.0
    %1164 = vmatprep.subr.mxu0 0.0
    %1165 = vmatpush1.msra.mxu0 0.0
    %1166 = vmatprep.subr.mxu0 0.0
    %1167 = vmatpush1.msra.mxu0 0.0
    %1168 = vmatprep.subr.mxu0 0.0
    %1169 = vmatpush1.msra.mxu0 0.0
    %1170 = vmatprep.subr.mxu0 0.0
    %1171 = vmatpush1.msra.mxu0 0.0
    %1172 = vmatprep.subr.mxu0 0.0
    %1173 = vmatpush1.msra.mxu0 0.0
    %1174 = vmatprep.subr.mxu0 0.0
    %1175 = vmatpush1.msra.mxu0 0.0
    %1176 = vmatprep.subr.mxu0 0.0
    %1177 = vmatpush1.msra.mxu0 0.0
    %1178 = vmatprep.subr.mxu0 0.0
    %1179 = vmatpush1.msra.mxu0 0.0
    %1180 = vmatprep.subr.mxu0 0.0
    %1181 = vmatpush1.msra.mxu0 0.0
    %1182 = vmatprep.subr.mxu0 0.0
    %1183 = vmatpush1.msra.mxu0 0.0
    %1184 = vmatprep.subr.mxu0 0.0
    %1185 = vmatpush1.msra.mxu0 0.0
    %1186 = vmatprep.mubr.f32.mxu0 0.0
    %1187 = vmatmul.mubr.f32.gmra.mrb[0].mxu0 %v184
    %v1188 = vpop.f32.mrb[0].mxu0
    %v1189 = vadd.f32 0.0, %v1188
    %v1190 = vpop.f32.mrb[0].mxu0
    %1191 = vdwg.mxu0
    %v1192 = vadd.f32 %v1114, %v1189
    %v1193 = vxor.u32 %v1192, 2147483648
    %v1194 = vmul.f32 %v1193, 1.442695
    %v1195 = vpow.pop %v1194
    %v1196 = vadd.f32 %v1195, 1.0
    %v1197 = vrcp.pop %v1196
    %v1198 = vmul.f32 1.0, %v1197
    %v1199 = vtanh.pop %v1192
    %v1200 = vmul.f32 %v1198, 0.0
    %1202 = vrot.lane.b32.xlu0 %v1199, 32
    %v1203 = vpop.permute.xlu0 %1202
    %v1205 = vmul.f32 %v1198, %v1203
    %1207 = vrot.lane.b32.xlu0 %v1205, 32
    %v1208 = vpop.permute.xlu0 %1207
    %v1210 = vadd.f32 %v1200, %v1208
    %v1211 = vtanh.pop %v1210
    %1213 = vrot.lane.b32.xlu0 %v1211, 32
    %v1214 = vpop.permute.xlu0 %1213
    %v1216 = vmul.f32 %v1198, %v1214
    %1218 = vrot.lane.b32.xlu0 %v1216, 64
    %v1219 = vpop.permute.xlu0 %1218
    %v1220 = vsel %vm182, %v1219, 0
    %1222 = vmatprep.subr.mxu0 0.0
    %1223 = vmatpush1.msra.mxu0 %v38
    %1224 = vmatprep.subr.mxu0 0.0
    %1225 = vmatpush1.msra.mxu0 %v39
    %1226 = vmatprep.subr.mxu0 0.0
    %1227 = vmatpush1.msra.mxu0 %v40
    %1228 = vmatprep.subr.mxu0 0.0
    %1229 = vmatpush1.msra.mxu0 %v41
    %1230 = vmatprep.subr.mxu0 0.0
    %1231 = vmatpush1.msra.mxu0 0.0
    %1232 = vmatprep.subr.mxu0 0.0
    %1233 = vmatpush1.msra.mxu0 0.0
    %1234 = vmatprep.subr.mxu0 0.0
    %1235 = vmatpush1.msra.mxu0 0.0
    %1236 = vmatprep.subr.mxu0 0.0
    %1237 = vmatpush1.msra.mxu0 0.0
    %1238 = vmatprep.subr.mxu0 0.0
    %1239 = vmatpush1.msra.mxu0 0.0
    %1240 = vmatprep.subr.mxu0 0.0
    %1241 = vmatpush1.msra.mxu0 0.0
    %1242 = vmatprep.subr.mxu0 0.0
    %1243 = vmatpush1.msra.mxu0 0.0
    %1244 = vmatprep.subr.mxu0 0.0
    %1245 = vmatpush1.msra.mxu0 0.0
    %1246 = vmatprep.subr.mxu0 0.0
    %1247 = vmatpush1.msra.mxu0 0.0
    %1248 = vmatprep.subr.mxu0 0.0
    %1249 = vmatpush1.msra.mxu0 0.0
    %1250 = vmatprep.subr.mxu0 0.0
    %1251 = vmatpush1.msra.mxu0 0.0
    %1252 = vmatprep.subr.mxu0 0.0
    %1253 = vmatpush1.msra.mxu0 0.0
    %1254 = vmatprep.subr.mxu0 0.0
    %1255 = vmatpush1.msra.mxu0 0.0
    %1256 = vmatprep.subr.mxu0 0.0
    %1257 = vmatpush1.msra.mxu0 0.0
    %1258 = vmatprep.subr.mxu0 0.0
    %1259 = vmatpush1.msra.mxu0 0.0
    %1260 = vmatprep.subr.mxu0 0.0
    %1261 = vmatpush1.msra.mxu0 0.0
    %1262 = vmatprep.subr.mxu0 0.0
    %1263 = vmatpush1.msra.mxu0 0.0
    %1264 = vmatprep.subr.mxu0 0.0
    %1265 = vmatpush1.msra.mxu0 0.0
    %1266 = vmatprep.subr.mxu0 0.0
    %1267 = vmatpush1.msra.mxu0 0.0
    %1268 = vmatprep.subr.mxu0 0.0
    %1269 = vmatpush1.msra.mxu0 0.0
    %1270 = vmatprep.subr.mxu0 0.0
    %1271 = vmatpush1.msra.mxu0 0.0
    %1272 = vmatprep.subr.mxu0 0.0
    %1273 = vmatpush1.msra.mxu0 0.0
    %1274 = vmatprep.subr.mxu0 0.0
    %1275 = vmatpush1.msra.mxu0 0.0
    %1276 = vmatprep.subr.mxu0 0.0
    %1277 = vmatpush1.msra.mxu0 0.0
    %1278 = vmatprep.subr.mxu0 0.0
    %1279 = vmatpush1.msra.mxu0 0.0
    %1280 = vmatprep.subr.mxu0 0.0
    %1281 = vmatpush1.msra.mxu0 0.0
    %1282 = vmatprep.subr.mxu0 0.0
    %1283 = vmatpush1.msra.mxu0 0.0
    %1284 = vmatprep.subr.mxu0 0.0
    %1285 = vmatpush1.msra.mxu0 0.0
    %1286 = vmatprep.mubr.f32.mxu0 0.0
    %1287 = vmatmul.mubr.f32.gmra.mrb[0].mxu0 %v1220
    %v1288 = vpop.f32.mrb[0].mxu0
    %v1289 = vadd.f32 0.0, %v1288
    %v1290 = vpop.f32.mrb[0].mxu0
    %1291 = vdwg.mxu0
    %v1293 = vrot.slane %v1289, 6
    %v1295 = vadd.f32 %v1114, %v1293
    %v1296 = vxor.u32 %v1295, 2147483648
    %v1297 = vmul.f32 %v1296, 1.442695
    %v1298 = vpow.pop %v1297
    %v1299 = vadd.f32 %v1298, 1.0
    %v1300 = vrcp.pop %v1299
    %v1301 = vmul.f32 1.0, %v1300
    %v1302 = vtanh.pop %v1295
    %v1304 = vrot.slane %v1210, 6
    %v1306 = vmul.f32 %v1301, %v1304
    %1308 = vrot.lane.b32.xlu0 %v1302, 32
    %v1309 = vpop.permute.xlu0 %1308
    %v1311 = vmul.f32 %v1301, %v1309
    %1313 = vrot.lane.b32.xlu0 %v1311, 32
    %v1314 = vpop.permute.xlu0 %1313
    %v1316 = vadd.f32 %v1306, %v1314
    %v1317 = vtanh.pop %v1316
    %1319 = vrot.lane.b32.xlu0 %v1317, 32
    %v1320 = vpop.permute.xlu0 %1319
    %v1322 = vmul.f32 %v1301, %v1320
    %v1324 = vrot.slane %v1322, 2
    %1325 = vrot.lane.b32.xlu0 %v1324, 64
    %v1326 = vpop.permute.xlu0 %1325
    %v1327 = vsel %vm182, %v1326, 0
    %1329 = vmatprep.subr.mxu0 0.0
    %1330 = vmatpush1.msra.mxu0 %v38
    %1331 = vmatprep.subr.mxu0 0.0
    %1332 = vmatpush1.msra.mxu0 %v39
    %1333 = vmatprep.subr.mxu0 0.0
    %1334 = vmatpush1.msra.mxu0 %v40
    %1335 = vmatprep.subr.mxu0 0.0
    %1336 = vmatpush1.msra.mxu0 %v41
    %1337 = vmatprep.subr.mxu0 0.0
    %1338 = vmatpush1.msra.mxu0 0.0
    %1339 = vmatprep.subr.mxu0 0.0
    %1340 = vmatpush1.msra.mxu0 0.0
    %1341 = vmatprep.subr.mxu0 0.0
    %1342 = vmatpush1.msra.mxu0 0.0
    %1343 = vmatprep.subr.mxu0 0.0
    %1344 = vmatpush1.msra.mxu0 0.0
    %1345 = vmatprep.subr.mxu0 0.0
    %1346 = vmatpush1.msra.mxu0 0.0
    %1347 = vmatprep.subr.mxu0 0.0
    %1348 = vmatpush1.msra.mxu0 0.0
    %1349 = vmatprep.subr.mxu0 0.0
    %1350 = vmatpush1.msra.mxu0 0.0
    %1351 = vmatprep.subr.mxu0 0.0
    %1352 = vmatpush1.msra.mxu0 0.0
    %1353 = vmatprep.subr.mxu0 0.0
    %1354 = vmatpush1.msra.mxu0 0.0
    %1355 = vmatprep.subr.mxu0 0.0
    %1356 = vmatpush1.msra.mxu0 0.0
    %1357 = vmatprep.subr.mxu0 0.0
    %1358 = vmatpush1.msra.mxu0 0.0
    %1359 = vmatprep.subr.mxu0 0.0
    %1360 = vmatpush1.msra.mxu0 0.0
    %1361 = vmatprep.subr.mxu0 0.0
    %1362 = vmatpush1.msra.mxu0 0.0
    %1363 = vmatprep.subr.mxu0 0.0
    %1364 = vmatpush1.msra.mxu0 0.0
    %1365 = vmatprep.subr.mxu0 0.0
    %1366 = vmatpush1.msra.mxu0 0.0
    %1367 = vmatprep.subr.mxu0 0.0
    %1368 = vmatpush1.msra.mxu0 0.0
    %1369 = vmatprep.subr.mxu0 0.0
    %1370 = vmatpush1.msra.mxu0 0.0
    %1371 = vmatprep.subr.mxu0 0.0
    %1372 = vmatpush1.msra.mxu0 0.0
    %1373 = vmatprep.subr.mxu0 0.0
    %1374 = vmatpush1.msra.mxu0 0.0
    %1375 = vmatprep.subr.mxu0 0.0
    %1376 = vmatpush1.msra.mxu0 0.0
    %1377 = vmatprep.subr.mxu0 0.0
    %1378 = vmatpush1.msra.mxu0 0.0
    %1379 = vmatprep.subr.mxu0 0.0
    %1380 = vmatpush1.msra.mxu0 0.0
    %1381 = vmatprep.subr.mxu0 0.0
    %1382 = vmatpush1.msra.mxu0 0.0
    %1383 = vmatprep.subr.mxu0 0.0
    %1384 = vmatpush1.msra.mxu0 0.0
    %1385 = vmatprep.subr.mxu0 0.0
    %1386 = vmatpush1.msra.mxu0 0.0
    %1387 = vmatprep.subr.mxu0 0.0
    %1388 = vmatpush1.msra.mxu0 0.0
    %1389 = vmatprep.subr.mxu0 0.0
    %1390 = vmatpush1.msra.mxu0 0.0
    %1391 = vmatprep.subr.mxu0 0.0
    %1392 = vmatpush1.msra.mxu0 0.0
    %1393 = vmatprep.mubr.f32.mxu0 0.0
    %1394 = vmatmul.mubr.f32.gmra.mrb[0].mxu0 %v1327
    %v1395 = vpop.f32.mrb[0].mxu0
    %v1396 = vadd.f32 0.0, %v1395
    %v1397 = vpop.f32.mrb[0].mxu0
    %1398 = vdwg.mxu0
    %v1400 = vrot.slane %v1396, 4
    %v1402 = vadd.f32 %v1114, %v1400
    %v1403 = vxor.u32 %v1402, 2147483648
    %v1404 = vmul.f32 %v1403, 1.442695
    %v1405 = vpow.pop %v1404
    %v1406 = vadd.f32 %v1405, 1.0
    %v1407 = vrcp.pop %v1406
    %v1408 = vmul.f32 1.0, %v1407
    %v1409 = vtanh.pop %v1402
    %v1411 = vrot.slane %v1316, 6
    %v1413 = vmul.f32 %v1408, %v1411
    %1415 = vrot.lane.b32.xlu0 %v1409, 32
    %v1416 = vpop.permute.xlu0 %1415
    %v1418 = vmul.f32 %v1408, %v1416
    %1420 = vrot.lane.b32.xlu0 %v1418, 32
    %v1421 = vpop.permute.xlu0 %1420
    %v1423 = vadd.f32 %v1413, %v1421
    %v1424 = vtanh.pop %v1423
    %1426 = vrot.lane.b32.xlu0 %v1424, 32
    %v1427 = vpop.permute.xlu0 %1426
    %v1429 = vmul.f32 %v1408, %v1427
    %v1431 = vrot.slane %v1429, 4
    %1432 = vrot.lane.b32.xlu0 %v1431, 64
    %v1433 = vpop.permute.xlu0 %1432
    %v1434 = vsel %vm182, %v1433, 0
    %1436 = vmatprep.subr.mxu0 0.0
    %1437 = vmatpush1.msra.mxu0 %v38
    %1438 = vmatprep.subr.mxu0 0.0
    %1439 = vmatpush1.msra.mxu0 %v39
    %1440 = vmatprep.subr.mxu0 0.0
    %1441 = vmatpush1.msra.mxu0 %v40
    %1442 = vmatprep.subr.mxu0 0.0
    %1443 = vmatpush1.msra.mxu0 %v41
    %1444 = vmatprep.subr.mxu0 0.0
    %1445 = vmatpush1.msra.mxu0 0.0
    %1446 = vmatprep.subr.mxu0 0.0
    %1447 = vmatpush1.msra.mxu0 0.0
    %1448 = vmatprep.subr.mxu0 0.0
    %1449 = vmatpush1.msra.mxu0 0.0
    %1450 = vmatprep.subr.mxu0 0.0
    %1451 = vmatpush1.msra.mxu0 0.0
    %1452 = vmatprep.subr.mxu0 0.0
    %1453 = vmatpush1.msra.mxu0 0.0
    %1454 = vmatprep.subr.mxu0 0.0
    %1455 = vmatpush1.msra.mxu0 0.0
    %1456 = vmatprep.subr.mxu0 0.0
    %1457 = vmatpush1.msra.mxu0 0.0
    %1458 = vmatprep.subr.mxu0 0.0
    %1459 = vmatpush1.msra.mxu0 0.0
    %1460 = vmatprep.subr.mxu0 0.0
    %1461 = vmatpush1.msra.mxu0 0.0
    %1462 = vmatprep.subr.mxu0 0.0
    %1463 = vmatpush1.msra.mxu0 0.0
    %1464 = vmatprep.subr.mxu0 0.0
    %1465 = vmatpush1.msra.mxu0 0.0
    %1466 = vmatprep.subr.mxu0 0.0
    %1467 = vmatpush1.msra.mxu0 0.0
    %1468 = vmatprep.subr.mxu0 0.0
    %1469 = vmatpush1.msra.mxu0 0.0
    %1470 = vmatprep.subr.mxu0 0.0
    %1471 = vmatpush1.msra.mxu0 0.0
    %1472 = vmatprep.subr.mxu0 0.0
    %1473 = vmatpush1.msra.mxu0 0.0
    %1474 = vmatprep.subr.mxu0 0.0
    %1475 = vmatpush1.msra.mxu0 0.0
    %1476 = vmatprep.subr.mxu0 0.0
    %1477 = vmatpush1.msra.mxu0 0.0
    %1478 = vmatprep.subr.mxu0 0.0
    %1479 = vmatpush1.msra.mxu0 0.0
    %1480 = vmatprep.subr.mxu0 0.0
    %1481 = vmatpush1.msra.mxu0 0.0
    %1482 = vmatprep.subr.mxu0 0.0
    %1483 = vmatpush1.msra.mxu0 0.0
    %1484 = vmatprep.subr.mxu0 0.0
    %1485 = vmatpush1.msra.mxu0 0.0
    %1486 = vmatprep.subr.mxu0 0.0
    %1487 = vmatpush1.msra.mxu0 0.0
    %1488 = vmatprep.subr.mxu0 0.0
    %1489 = vmatpush1.msra.mxu0 0.0
    %1490 = vmatprep.subr.mxu0 0.0
    %1491 = vmatpush1.msra.mxu0 0.0
    %1492 = vmatprep.subr.mxu0 0.0
    %1493 = vmatpush1.msra.mxu0 0.0
    %1494 = vmatprep.subr.mxu0 0.0
    %1495 = vmatpush1.msra.mxu0 0.0
    %1496 = vmatprep.subr.mxu0 0.0
    %1497 = vmatpush1.msra.mxu0 0.0
    %1498 = vmatprep.subr.mxu0 0.0
    %1499 = vmatpush1.msra.mxu0 0.0
    %1500 = vmatprep.mubr.f32.mxu0 0.0
    %1501 = vmatmul.mubr.f32.gmra.mrb[0].mxu0 %v1434
    %v1502 = vpop.f32.mrb[0].mxu0
    %v1503 = vadd.f32 0.0, %v1502
    %v1504 = vpop.f32.mrb[0].mxu0
    %1505 = vdwg.mxu0
    %v1507 = vrot.slane %v1503, 2
    %v1509 = vadd.f32 %v1114, %v1507
    %v1510 = vxor.u32 %v1509, 2147483648
    %v1511 = vmul.f32 %v1510, 1.442695
    %v1512 = vpow.pop %v1511
    %v1513 = vadd.f32 %v1512, 1.0
    %v1514 = vrcp.pop %v1513
    %v1515 = vmul.f32 1.0, %v1514
    %v1516 = vtanh.pop %v1509
    %v1518 = vrot.slane %v1423, 6
    %v1520 = vmul.f32 %v1515, %v1518
    %1522 = vrot.lane.b32.xlu0 %v1516, 32
    %v1523 = vpop.permute.xlu0 %1522
    %v1525 = vmul.f32 %v1515, %v1523
    %1527 = vrot.lane.b32.xlu0 %v1525, 32
    %v1528 = vpop.permute.xlu0 %1527
    %v1530 = vadd.f32 %v1520, %v1528
    %v1531 = vtanh.pop %v1530
    %1533 = vrot.lane.b32.xlu0 %v1531, 32
    %v1534 = vpop.permute.xlu0 %1533
    %v1536 = vmul.f32 %v1515, %v1534
    %v1538 = vrot.slane %v1536, 6
    %1539 = vrot.lane.b32.xlu0 %v1538, 64
    %v1540 = vpop.permute.xlu0 %1539
    %v1541 = vsel %vm182, %v1540, 0
    %1543 = vmatprep.subr.mxu0 0.0
    %1544 = vmatpush1.msra.mxu0 %v38
    %1545 = vmatprep.subr.mxu0 0.0
    %1546 = vmatpush1.msra.mxu0 %v39
    %1547 = vmatprep.subr.mxu0 0.0
    %1548 = vmatpush1.msra.mxu0 %v40
    %1549 = vmatprep.subr.mxu0 0.0
    %1550 = vmatpush1.msra.mxu0 %v41
    %1551 = vmatprep.subr.mxu0 0.0
    %1552 = vmatpush1.msra.mxu0 0.0
    %1553 = vmatprep.subr.mxu0 0.0
    %1554 = vmatpush1.msra.mxu0 0.0
    %1555 = vmatprep.subr.mxu0 0.0
    %1556 = vmatpush1.msra.mxu0 0.0
    %1557 = vmatprep.subr.mxu0 0.0
    %1558 = vmatpush1.msra.mxu0 0.0
    %1559 = vmatprep.subr.mxu0 0.0
    %1560 = vmatpush1.msra.mxu0 0.0
    %1561 = vmatprep.subr.mxu0 0.0
    %1562 = vmatpush1.msra.mxu0 0.0
    %1563 = vmatprep.subr.mxu0 0.0
    %1564 = vmatpush1.msra.mxu0 0.0
    %1565 = vmatprep.subr.mxu0 0.0
    %1566 = vmatpush1.msra.mxu0 0.0
    %1567 = vmatprep.subr.mxu0 0.0
    %1568 = vmatpush1.msra.mxu0 0.0
    %1569 = vmatprep.subr.mxu0 0.0
    %1570 = vmatpush1.msra.mxu0 0.0
    %1571 = vmatprep.subr.mxu0 0.0
    %1572 = vmatpush1.msra.mxu0 0.0
    %1573 = vmatprep.subr.mxu0 0.0
    %1574 = vmatpush1.msra.mxu0 0.0
    %1575 = vmatprep.subr.mxu0 0.0
    %1576 = vmatpush1.msra.mxu0 0.0
    %1577 = vmatprep.subr.mxu0 0.0
    %1578 = vmatpush1.msra.mxu0 0.0
    %1579 = vmatprep.subr.mxu0 0.0
    %1580 = vmatpush1.msra.mxu0 0.0
    %1581 = vmatprep.subr.mxu0 0.0
    %1582 = vmatpush1.msra.mxu0 0.0
    %1583 = vmatprep.subr.mxu0 0.0
    %1584 = vmatpush1.msra.mxu0 0.0
    %1585 = vmatprep.subr.mxu0 0.0
    %1586 = vmatpush1.msra.mxu0 0.0
    %1587 = vmatprep.subr.mxu0 0.0
    %1588 = vmatpush1.msra.mxu0 0.0
    %1589 = vmatprep.subr.mxu0 0.0
    %1590 = vmatpush1.msra.mxu0 0.0
    %1591 = vmatprep.subr.mxu0 0.0
    %1592 = vmatpush1.msra.mxu0 0.0
    %1593 = vmatprep.subr.mxu0 0.0
    %1594 = vmatpush1.msra.mxu0 0.0
    %1595 = vmatprep.subr.mxu0 0.0
    %1596 = vmatpush1.msra.mxu0 0.0
    %1597 = vmatprep.subr.mxu0 0.0
    %1598 = vmatpush1.msra.mxu0 0.0
    %1599 = vmatprep.subr.mxu0 0.0
    %1600 = vmatpush1.msra.mxu0 0.0
    %1601 = vmatprep.subr.mxu0 0.0
    %1602 = vmatpush1.msra.mxu0 0.0
    %1603 = vmatprep.subr.mxu0 0.0
    %1604 = vmatpush1.msra.mxu0 0.0
    %1605 = vmatprep.subr.mxu0 0.0
    %1606 = vmatpush1.msra.mxu0 0.0
    %1607 = vmatprep.mubr.f32.mxu0 0.0
    %1608 = vmatmul.mubr.f32.gmra.mrb[0].mxu0 %v1541
    %v1609 = vpop.f32.mrb[0].mxu0
    %v1610 = vadd.f32 0.0, %v1609
    %v1611 = vpop.f32.mrb[0].mxu0
    %1612 = vdwg.mxu0
    %v1613 = vadd.f32 %v1119, %v1610
    %v1614 = vxor.u32 %v1613, 2147483648
    %v1615 = vmul.f32 %v1614, 1.442695
    %v1616 = vpow.pop %v1615
    %v1617 = vadd.f32 %v1616, 1.0
    %v1618 = vrcp.pop %v1617
    %v1619 = vmul.f32 1.0, %v1618
    %v1620 = vtanh.pop %v1613
    %v1622 = vrot.slane %v1530, 6
    %v1624 = vmul.f32 %v1619, %v1622
    %1626 = vrot.lane.b32.xlu0 %v1620, 32
    %v1627 = vpop.permute.xlu0 %1626
    %v1629 = vmul.f32 %v1619, %v1627
    %1631 = vrot.lane.b32.xlu0 %v1629, 32
    %v1632 = vpop.permute.xlu0 %1631
    %v1634 = vadd.f32 %v1624, %v1632
    %v1635 = vtanh.pop %v1634
    %1637 = vrot.lane.b32.xlu0 %v1635, 32
    %v1638 = vpop.permute.xlu0 %1637
    %v1640 = vmul.f32 %v1619, %v1638
    %1642 = vrot.lane.b32.xlu0 %v1640, 64
    %v1643 = vpop.permute.xlu0 %1642
    %v1644 = vsel %vm182, %v1643, 0
    %1646 = vmatprep.subr.mxu0 0.0
    %1647 = vmatpush1.msra.mxu0 %v38
    %1648 = vmatprep.subr.mxu0 0.0
    %1649 = vmatpush1.msra.mxu0 %v39
    %1650 = vmatprep.subr.mxu0 0.0
    %1651 = vmatpush1.msra.mxu0 %v40
    %1652 = vmatprep.subr.mxu0 0.0
    %1653 = vmatpush1.msra.mxu0 %v41
    %1654 = vmatprep.subr.mxu0 0.0
    %1655 = vmatpush1.msra.mxu0 0.0
    %1656 = vmatprep.subr.mxu0 0.0
    %1657 = vmatpush1.msra.mxu0 0.0
    %1658 = vmatprep.subr.mxu0 0.0
    %1659 = vmatpush1.msra.mxu0 0.0
    %1660 = vmatprep.subr.mxu0 0.0
    %1661 = vmatpush1.msra.mxu0 0.0
    %1662 = vmatprep.subr.mxu0 0.0
    %1663 = vmatpush1.msra.mxu0 0.0
    %1664 = vmatprep.subr.mxu0 0.0
    %1665 = vmatpush1.msra.mxu0 0.0
    %1666 = vmatprep.subr.mxu0 0.0
    %1667 = vmatpush1.msra.mxu0 0.0
    %1668 = vmatprep.subr.mxu0 0.0
    %1669 = vmatpush1.msra.mxu0 0.0
    %1670 = vmatprep.subr.mxu0 0.0
    %1671 = vmatpush1.msra.mxu0 0.0
    %1672 = vmatprep.subr.mxu0 0.0
    %1673 = vmatpush1.msra.mxu0 0.0
    %1674 = vmatprep.subr.mxu0 0.0
    %1675 = vmatpush1.msra.mxu0 0.0
    %1676 = vmatprep.subr.mxu0 0.0
    %1677 = vmatpush1.msra.mxu0 0.0
    %1678 = vmatprep.subr.mxu0 0.0
    %1679 = vmatpush1.msra.mxu0 0.0
    %1680 = vmatprep.subr.mxu0 0.0
    %1681 = vmatpush1.msra.mxu0 0.0
    %1682 = vmatprep.subr.mxu0 0.0
    %1683 = vmatpush1.msra.mxu0 0.0
    %1684 = vmatprep.subr.mxu0 0.0
    %1685 = vmatpush1.msra.mxu0 0.0
    %1686 = vmatprep.subr.mxu0 0.0
    %1687 = vmatpush1.msra.mxu0 0.0
    %1688 = vmatprep.subr.mxu0 0.0
    %1689 = vmatpush1.msra.mxu0 0.0
    %1690 = vmatprep.subr.mxu0 0.0
    %1691 = vmatpush1.msra.mxu0 0.0
    %1692 = vmatprep.subr.mxu0 0.0
    %1693 = vmatpush1.msra.mxu0 0.0
    %1694 = vmatprep.subr.mxu0 0.0
    %1695 = vmatpush1.msra.mxu0 0.0
    %1696 = vmatprep.subr.mxu0 0.0
    %1697 = vmatpush1.msra.mxu0 0.0
    %1698 = vmatprep.subr.mxu0 0.0
    %1699 = vmatpush1.msra.mxu0 0.0
    %1700 = vmatprep.subr.mxu0 0.0
    %1701 = vmatpush1.msra.mxu0 0.0
    %1702 = vmatprep.subr.mxu0 0.0
    %1703 = vmatpush1.msra.mxu0 0.0
    %1704 = vmatprep.subr.mxu0 0.0
    %1705 = vmatpush1.msra.mxu0 0.0
    %1706 = vmatprep.subr.mxu0 0.0
    %1707 = vmatpush1.msra.mxu0 0.0
    %1708 = vmatprep.subr.mxu0 0.0
    %1709 = vmatpush1.msra.mxu0 0.0
    %1710 = vmatprep.mubr.f32.mxu0 0.0
    %1711 = vmatmul.mubr.f32.gmra.mrb[0].mxu0 %v1644
    %v1712 = vpop.f32.mrb[0].mxu0
    %v1713 = vadd.f32 0.0, %v1712
    %v1714 = vpop.f32.mrb[0].mxu0
    %1715 = vdwg.mxu0
    %v1717 = vrot.slane %v1713, 6
    %v1719 = vadd.f32 %v1119, %v1717
    %v1720 = vxor.u32 %v1719, 2147483648
    %v1721 = vmul.f32 %v1720, 1.442695
    %v1722 = vpow.pop %v1721
    %v1723 = vadd.f32 %v1722, 1.0
    %v1724 = vrcp.pop %v1723
    %v1725 = vmul.f32 1.0, %v1724
    %v1726 = vtanh.pop %v1719
    %v1728 = vrot.slane %v1634, 6
    %v1730 = vmul.f32 %v1725, %v1728
    %1732 = vrot.lane.b32.xlu0 %v1726, 32
    %v1733 = vpop.permute.xlu0 %1732
    %v1735 = vmul.f32 %v1725, %v1733
    %1737 = vrot.lane.b32.xlu0 %v1735, 32
    %v1738 = vpop.permute.xlu0 %1737
    %v1740 = vadd.f32 %v1730, %v1738
    %v1741 = vtanh.pop %v1740
    %1743 = vrot.lane.b32.xlu0 %v1741, 32
    %v1744 = vpop.permute.xlu0 %1743
    %v1746 = vmul.f32 %v1725, %v1744
    %v1748 = vrot.slane %v1746, 2
    %1749 = vrot.lane.b32.xlu0 %v1748, 64
    %v1750 = vpop.permute.xlu0 %1749
    %v1751 = vsel %vm182, %v1750, 0
    %1753 = vmatprep.subr.mxu0 0.0
    %1754 = vmatpush1.msra.mxu0 %v38
    %1755 = vmatprep.subr.mxu0 0.0
    %1756 = vmatpush1.msra.mxu0 %v39
    %1757 = vmatprep.subr.mxu0 0.0
    %1758 = vmatpush1.msra.mxu0 %v40
    %1759 = vmatprep.subr.mxu0 0.0
    %1760 = vmatpush1.msra.mxu0 %v41
    %1761 = vmatprep.subr.mxu0 0.0
    %1762 = vmatpush1.msra.mxu0 0.0
    %1763 = vmatprep.subr.mxu0 0.0
    %1764 = vmatpush1.msra.mxu0 0.0
    %1765 = vmatprep.subr.mxu0 0.0
    %1766 = vmatpush1.msra.mxu0 0.0
    %1767 = vmatprep.subr.mxu0 0.0
    %1768 = vmatpush1.msra.mxu0 0.0
    %1769 = vmatprep.subr.mxu0 0.0
    %1770 = vmatpush1.msra.mxu0 0.0
    %1771 = vmatprep.subr.mxu0 0.0
    %1772 = vmatpush1.msra.mxu0 0.0
    %1773 = vmatprep.subr.mxu0 0.0
    %1774 = vmatpush1.msra.mxu0 0.0
    %1775 = vmatprep.subr.mxu0 0.0
    %1776 = vmatpush1.msra.mxu0 0.0
    %1777 = vmatprep.subr.mxu0 0.0
    %1778 = vmatpush1.msra.mxu0 0.0
    %1779 = vmatprep.subr.mxu0 0.0
    %1780 = vmatpush1.msra.mxu0 0.0
    %1781 = vmatprep.subr.mxu0 0.0
    %1782 = vmatpush1.msra.mxu0 0.0
    %1783 = vmatprep.subr.mxu0 0.0
    %1784 = vmatpush1.msra.mxu0 0.0
    %1785 = vmatprep.subr.mxu0 0.0
    %1786 = vmatpush1.msra.mxu0 0.0
    %1787 = vmatprep.subr.mxu0 0.0
    %1788 = vmatpush1.msra.mxu0 0.0
    %1789 = vmatprep.subr.mxu0 0.0
    %1790 = vmatpush1.msra.mxu0 0.0
    %1791 = vmatprep.subr.mxu0 0.0
    %1792 = vmatpush1.msra.mxu0 0.0
    %1793 = vmatprep.subr.mxu0 0.0
    %1794 = vmatpush1.msra.mxu0 0.0
    %1795 = vmatprep.subr.mxu0 0.0
    %1796 = vmatpush1.msra.mxu0 0.0
    %1797 = vmatprep.subr.mxu0 0.0
    %1798 = vmatpush1.msra.mxu0 0.0
    %1799 = vmatprep.subr.mxu0 0.0
    %1800 = vmatpush1.msra.mxu0 0.0
    %1801 = vmatprep.subr.mxu0 0.0
    %1802 = vmatpush1.msra.mxu0 0.0
    %1803 = vmatprep.subr.mxu0 0.0
    %1804 = vmatpush1.msra.mxu0 0.0
    %1805 = vmatprep.subr.mxu0 0.0
    %1806 = vmatpush1.msra.mxu0 0.0
    %1807 = vmatprep.subr.mxu0 0.0
    %1808 = vmatpush1.msra.mxu0 0.0
    %1809 = vmatprep.subr.mxu0 0.0
    %1810 = vmatpush1.msra.mxu0 0.0
    %1811 = vmatprep.subr.mxu0 0.0
    %1812 = vmatpush1.msra.mxu0 0.0
    %1813 = vmatprep.subr.mxu0 0.0
    %1814 = vmatpush1.msra.mxu0 0.0
    %1815 = vmatprep.subr.mxu0 0.0
    %1816 = vmatpush1.msra.mxu0 0.0
    %1817 = vmatprep.mubr.f32.mxu0 0.0
    %1818 = vmatmul.mubr.f32.gmra.mrb[0].mxu0 %v1751
    %v1819 = vpop.f32.mrb[0].mxu0
    %v1820 = vadd.f32 0.0, %v1819
    %v1821 = vpop.f32.mrb[0].mxu0
    %1822 = vdwg.mxu0
    %v1824 = vrot.slane %v1820, 4
    %v1826 = vadd.f32 %v1119, %v1824
    %v1827 = vxor.u32 %v1826, 2147483648
    %v1828 = vmul.f32 %v1827, 1.442695
    %v1829 = vpow.pop %v1828
    %v1830 = vadd.f32 %v1829, 1.0
    %v1831 = vrcp.pop %v1830
    %v1832 = vmul.f32 1.0, %v1831
    %v1833 = vtanh.pop %v1826
    %v1835 = vrot.slane %v1740, 6
    %v1837 = vmul.f32 %v1832, %v1835
    %1839 = vrot.lane.b32.xlu0 %v1833, 32
    %v1840 = vpop.permute.xlu0 %1839
    %v1842 = vmul.f32 %v1832, %v1840
    %1844 = vrot.lane.b32.xlu0 %v1842, 32
    %v1845 = vpop.permute.xlu0 %1844
    %v1847 = vadd.f32 %v1837, %v1845
    %v1848 = vtanh.pop %v1847
    %1850 = vrot.lane.b32.xlu0 %v1848, 32
    %v1851 = vpop.permute.xlu0 %1850
    %v1853 = vmul.f32 %v1832, %v1851
    %v1855 = vrot.slane %v1853, 4
    %1856 = vrot.lane.b32.xlu0 %v1855, 64
    %v1857 = vpop.permute.xlu0 %1856
    %v1858 = vsel %vm182, %v1857, 0
    %1860 = vmatprep.subr.mxu0 0.0
    %1861 = vmatpush1.msra.mxu0 %v38
    %1862 = vmatprep.subr.mxu0 0.0
    %1863 = vmatpush1.msra.mxu0 %v39
    %1864 = vmatprep.subr.mxu0 0.0
    %1865 = vmatpush1.msra.mxu0 %v40
    %1866 = vmatprep.subr.mxu0 0.0
    %1867 = vmatpush1.msra.mxu0 %v41
    %1868 = vmatprep.subr.mxu0 0.0
    %1869 = vmatpush1.msra.mxu0 0.0
    %1870 = vmatprep.subr.mxu0 0.0
    %1871 = vmatpush1.msra.mxu0 0.0
    %1872 = vmatprep.subr.mxu0 0.0
    %1873 = vmatpush1.msra.mxu0 0.0
    %1874 = vmatprep.subr.mxu0 0.0
    %1875 = vmatpush1.msra.mxu0 0.0
    %1876 = vmatprep.subr.mxu0 0.0
    %1877 = vmatpush1.msra.mxu0 0.0
    %1878 = vmatprep.subr.mxu0 0.0
    %1879 = vmatpush1.msra.mxu0 0.0
    %1880 = vmatprep.subr.mxu0 0.0
    %1881 = vmatpush1.msra.mxu0 0.0
    %1882 = vmatprep.subr.mxu0 0.0
    %1883 = vmatpush1.msra.mxu0 0.0
    %1884 = vmatprep.subr.mxu0 0.0
    %1885 = vmatpush1.msra.mxu0 0.0
    %1886 = vmatprep.subr.mxu0 0.0
    %1887 = vmatpush1.msra.mxu0 0.0
    %1888 = vmatprep.subr.mxu0 0.0
    %1889 = vmatpush1.msra.mxu0 0.0
    %1890 = vmatprep.subr.mxu0 0.0
    %1891 = vmatpush1.msra.mxu0 0.0
    %1892 = vmatprep.subr.mxu0 0.0
    %1893 = vmatpush1.msra.mxu0 0.0
    %1894 = vmatprep.subr.mxu0 0.0
    %1895 = vmatpush1.msra.mxu0 0.0
    %1896 = vmatprep.subr.mxu0 0.0
    %1897 = vmatpush1.msra.mxu0 0.0
    %1898 = vmatprep.subr.mxu0 0.0
    %1899 = vmatpush1.msra.mxu0 0.0
    %1900 = vmatprep.subr.mxu0 0.0
    %1901 = vmatpush1.msra.mxu0 0.0
    %1902 = vmatprep.subr.mxu0 0.0
    %1903 = vmatpush1.msra.mxu0 0.0
    %1904 = vmatprep.subr.mxu0 0.0
    %1905 = vmatpush1.msra.mxu0 0.0
    %1906 = vmatprep.subr.mxu0 0.0
    %1907 = vmatpush1.msra.mxu0 0.0
    %1908 = vmatprep.subr.mxu0 0.0
    %1909 = vmatpush1.msra.mxu0 0.0
    %1910 = vmatprep.subr.mxu0 0.0
    %1911 = vmatpush1.msra.mxu0 0.0
    %1912 = vmatprep.subr.mxu0 0.0
    %1913 = vmatpush1.msra.mxu0 0.0
    %1914 = vmatprep.subr.mxu0 0.0
    %1915 = vmatpush1.msra.mxu0 0.0
    %1916 = vmatprep.subr.mxu0 0.0
    %1917 = vmatpush1.msra.mxu0 0.0
    %1918 = vmatprep.subr.mxu0 0.0
    %1919 = vmatpush1.msra.mxu0 0.0
    %1920 = vmatprep.subr.mxu0 0.0
    %1921 = vmatpush1.msra.mxu0 0.0
    %1922 = vmatprep.subr.mxu0 0.0
    %1923 = vmatpush1.msra.mxu0 0.0
    %1924 = vmatprep.mubr.f32.mxu0 0.0
    %1925 = vmatmul.mubr.f32.gmra.mrb[0].mxu0 %v1858
    %v1926 = vpop.f32.mrb[0].mxu0
    %v1927 = vadd.f32 0.0, %v1926
    %v1928 = vpop.f32.mrb[0].mxu0
    %1929 = vdwg.mxu0
    %v1931 = vrot.slane %v1927, 2
    %v1933 = vadd.f32 %v1119, %v1931
    %v1934 = vxor.u32 %v1933, 2147483648
    %v1935 = vmul.f32 %v1934, 1.442695
    %v1936 = vpow.pop %v1935
    %v1937 = vadd.f32 %v1936, 1.0
    %v1938 = vrcp.pop %v1937
    %v1939 = vmul.f32 1.0, %v1938
    %v1940 = vtanh.pop %v1933
    %v1942 = vrot.slane %v1847, 6
    %v1944 = vmul.f32 %v1939, %v1942
    %1946 = vrot.lane.b32.xlu0 %v1940, 32
    %v1947 = vpop.permute.xlu0 %1946
    %v1949 = vmul.f32 %v1939, %v1947
    %1951 = vrot.lane.b32.xlu0 %v1949, 32
    %v1952 = vpop.permute.xlu0 %1951
    %v1954 = vadd.f32 %v1944, %v1952
    %v1955 = vtanh.pop %v1954
    %1957 = vrot.lane.b32.xlu0 %v1955, 32
    %v1958 = vpop.permute.xlu0 %1957
    %v1960 = vmul.f32 %v1939, %v1958
    %v1961 = vld [vmem:[%s2] sm:$0xff]
    %v1962 = vld [vmem:[%s2 + $0x8] sm:$0xff]
    %v1963 = vld [vmem:[%s2 + $0x10] sm:$0xff]
    %v1964 = vld [vmem:[%s2 + $0x18] sm:$0xff]
    %v1965 = vld [vmem:[%s2 + $0x20] sm:$0x1]
    %v1966 = vlaneseq
    %v1967 = vshrl.u32 %v1966, 7
    %v1968 = vsub.s32 0, %v1967
    %v1969 = vrot.slane %v1965, %v1968
    %v1971 = vrot.slane %v1960, 6
    %1972 = vrot.lane.b32.xlu0 %v1971, 64
    %v1973 = vpop.permute.xlu0 %1972
    %v1974 = vsel %vm182, %v1973, 0
    %1976 = vmatprep.subr.mxu0 0.0
    %1977 = vmatpush1.msra.mxu0 %v1961
    %1978 = vmatprep.subr.mxu0 0.0
    %1979 = vmatpush1.msra.mxu0 %v1962
    %1980 = vmatprep.subr.mxu0 0.0
    %1981 = vmatpush1.msra.mxu0 %v1963
    %1982 = vmatprep.subr.mxu0 0.0
    %1983 = vmatpush1.msra.mxu0 %v1964
    %1984 = vmatprep.subr.mxu0 0.0
    %1985 = vmatpush1.msra.mxu0 0.0
    %1986 = vmatprep.subr.mxu0 0.0
    %1987 = vmatpush1.msra.mxu0 0.0
    %1988 = vmatprep.subr.mxu0 0.0
    %1989 = vmatpush1.msra.mxu0 0.0
    %1990 = vmatprep.subr.mxu0 0.0
    %1991 = vmatpush1.msra.mxu0 0.0
    %1992 = vmatprep.subr.mxu0 0.0
    %1993 = vmatpush1.msra.mxu0 0.0
    %1994 = vmatprep.subr.mxu0 0.0
    %1995 = vmatpush1.msra.mxu0 0.0
    %1996 = vmatprep.subr.mxu0 0.0
    %1997 = vmatpush1.msra.mxu0 0.0
    %1998 = vmatprep.subr.mxu0 0.0
    %1999 = vmatpush1.msra.mxu0 0.0
    %2000 = vmatprep.subr.mxu0 0.0
    %2001 = vmatpush1.msra.mxu0 0.0
    %2002 = vmatprep.subr.mxu0 0.0
    %2003 = vmatpush1.msra.mxu0 0.0
    %2004 = vmatprep.subr.mxu0 0.0
    %2005 = vmatpush1.msra.mxu0 0.0
    %2006 = vmatprep.subr.mxu0 0.0
    %2007 = vmatpush1.msra.mxu0 0.0
    %2008 = vmatprep.subr.mxu0 0.0
    %2009 = vmatpush1.msra.mxu0 0.0
    %2010 = vmatprep.subr.mxu0 0.0
    %2011 = vmatpush1.msra.mxu0 0.0
    %2012 = vmatprep.subr.mxu0 0.0
    %2013 = vmatpush1.msra.mxu0 0.0
    %2014 = vmatprep.subr.mxu0 0.0
    %2015 = vmatpush1.msra.mxu0 0.0
    %2016 = vmatprep.subr.mxu0 0.0
    %2017 = vmatpush1.msra.mxu0 0.0
    %2018 = vmatprep.subr.mxu0 0.0
    %2019 = vmatpush1.msra.mxu0 0.0
    %2020 = vmatprep.subr.mxu0 0.0
    %2021 = vmatpush1.msra.mxu0 0.0
    %2022 = vmatprep.subr.mxu0 0.0
    %2023 = vmatpush1.msra.mxu0 0.0
    %2024 = vmatprep.subr.mxu0 0.0
    %2025 = vmatpush1.msra.mxu0 0.0
    %2026 = vmatprep.subr.mxu0 0.0
    %2027 = vmatpush1.msra.mxu0 0.0
    %2028 = vmatprep.subr.mxu0 0.0
    %2029 = vmatpush1.msra.mxu0 0.0
    %2030 = vmatprep.subr.mxu0 0.0
    %2031 = vmatpush1.msra.mxu0 0.0
    %2032 = vmatprep.subr.mxu0 0.0
    %2033 = vmatpush1.msra.mxu0 0.0
    %2034 = vmatprep.subr.mxu0 0.0
    %2035 = vmatpush1.msra.mxu0 0.0
    %2036 = vmatprep.subr.mxu0 0.0
    %2037 = vmatpush1.msra.mxu0 0.0
    %2038 = vmatprep.subr.mxu0 0.0
    %2039 = vmatpush1.msra.mxu0 0.0
    %2040 = vmatprep.mubr.f32.mxu0 0.0
    %2041 = vmatmul.mubr.f32.gmra.mrb[0].mxu0 %v1974
    %v2042 = vpop.f32.mrb[0].mxu0
    %v2043 = vadd.f32 %v1969, %v2042
    %v2044 = vpop.f32.mrb[0].mxu0
    %2045 = vdwg.mxu0
    %vm2046 = vcmask 17408
    %2047 = vst.msk [vmem:[#allocation5] sm:$0x3] %vm2046, %v2043
    // Predicated region
    $region18: #{tpu_custom_call.1} parent=1 // pred_check
      _
    $region19: #{tpu_custom_call.1} parent=1 // pred_check_branch
      %2049 = sbr.rel (0) target = $region21
    $region20: #{tpu_custom_call.1} parent=1 // pred_region
      %s2051 = ssub.s32 32, 32
      %2052 = vsyncadd [#allocation4], %s2051
      %s2054 = sshll.u32 [#allocation5], 4
      %s2055 = int_to_ptr.vmem [resolvable:$true] %s2054
      %2057 = dma.vmem_to_hbm [thread:$0]  %s2055, 32, %s3, [#allocation4]
    $region21: #{tpu_custom_call.1} parent=1 // pred_fallthru
      _
    // Predicated region
    $region22: #{tpu_custom_call.1} parent=1 // pred_check
      _
    $region23: #{tpu_custom_call.1} parent=1 // pred_check_branch
      %2059 = sbr.rel (0) target = $region25
    $region24: #{tpu_custom_call.1} parent=1 // pred_region
      %2060 = dma.done [#allocation4], 32
    $region25: #{tpu_custom_call.1} parent=1 // pred_fallthru
      _
    %2061 = vsyncpa [#allocation3], 1
    %2062 = vsyncpa [#allocation4], 1

</llo_original>
